<compile_context>
chip_gen: v5e
topology: v5e:2x2
jax: 0.10.0
libtpu: 0.0.40
codegen_flags: <defaults>
</compile_context>

<pallas_src>
import functools

import jax
import jax.numpy as jnp
from jax import lax
from jax.experimental import pallas as pl
from jax.experimental.pallas import tpu as pltpu


def _lstm_kernel(x_ref, h0_ref, c0_ref,
                 w0_ref, b0_ref, whh0_ref,
                 wih1_ref, whh1_ref, b1_ref,
                 wlin_ref, blin_ref,
                 out_ref,
                 xp_ref):
    """Whole 2-layer LSTM + final Linear in one kernel invocation.

    x_ref:    (T*Bp, F)   time-major input, batch padded to Bp (multiple of 8)
    h0_ref:   (2, Bp, H)  initial hidden state
    c0_ref:   (2, Bp, H)  initial cell state
    w0_ref:   (F, 4H)     layer-0 input weights, gate-packed (i,f,g,o), g band *2
    b0_ref:   (1, 4H)     layer-0 bias (b_ih + b_hh), gate-packed, g band *2
    whh0_ref: (H, 4H)     layer-0 recurrent weights, gate-packed, g band *2
    wih1_ref: (H, 4H)     layer-1 input weights, gate-packed, g band *2
    whh1_ref: (H, 4H)     layer-1 recurrent weights, gate-packed, g band *2
    b1_ref:   (1, 4H)     layer-1 bias, gate-packed, g band *2
    wlin_ref: (H, P),  blin_ref: (1, P)
    out_ref:  (Bp, P)
    xp_ref:   (T*Bp, 4H)  scratch: hoisted, gate-packed layer-0 input projection
    """
    Bp = h0_ref.shape[1]
    H = whh0_ref.shape[0]
    T = x_ref.shape[0] // Bp

    dotf = functools.partial(jnp.dot, preferred_element_type=jnp.float32)

    # ---- Prologue: gate-fused, hoisted layer-0 input projection.
    # One lane-dense (T*Bp, F) @ (F, 128) matmul; single unmasked lane-dense store.
    xp_ref[...] = dotf(x_ref[...], w0_ref[...]) + b0_ref[...]

    # Loop-invariant weight loads (hoisted out of the recurrence).
    whh0 = whh0_ref[...]    # (H, 4H)
    wih1 = wih1_ref[...]    # (H, 4H)
    whh1 = whh1_ref[...]    # (H, 4H)
    b1 = b1_ref[...]        # (1, 4H)

    def activate(gates):
        # g-gate pre-activation columns are pre-scaled by 2 in the wrapper, so a
        # single packed sigmoid over the (Bp, 4H) block yields sigmoid(i),
        # sigmoid(f), sigmoid(2*g_pre), sigmoid(o); tanh(g_pre) = 2*sigmoid(2*g_pre) - 1.
        s = jax.nn.sigmoid(gates)
        i = s[:, 0 * H:1 * H]
        f = s[:, 1 * H:2 * H]
        g = 2.0 * s[:, 2 * H:3 * H] - 1.0
        o = s[:, 3 * H:4 * H]
        return i, f, g, o

    def cell0(xp_t, h_prev, c_prev):
        # Input projection precomputed; one N=128 recurrent matmul.
        gates = xp_t + dotf(h_prev, whh0)
        i, f, g, o = activate(gates)
        c_new = f * c_prev + i * g
        return o * jnp.tanh(c_new), c_new

    def cell1(x_in, h_prev, c_prev):
        # Two independent gate-fused N=128 matmuls (issue back-to-back on the MXU).
        gates = dotf(x_in, wih1) + dotf(h_prev, whh1) + b1
        i, f, g, o = activate(gates)
        c_new = f * c_prev + i * g
        return o * jnp.tanh(c_new), c_new

    def xp_at(t):
        row = pl.multiple_of(t * Bp, Bp)
        return xp_ref[pl.ds(row, Bp), :]

    # ---- Software-pipelined recurrence: iteration t computes layer-0(t) and
    # layer-1(t-1); both depend only on the carry, so their matmuls overlap.
    h0c, c0c = h0_ref[0], c0_ref[0]
    h1c, c1c = h0_ref[1], c0_ref[1]

    # Pipeline prologue: layer-0 at t = 0 (static slice of the scratch).
    h0c, c0c = cell0(xp_ref[0:Bp, :], h0c, c0c)
    h0_pipe = h0c

    def step(t, carry):
        h0p, c0p, h1p, c1p, h0_prev = carry
        h0n, c0n = cell0(xp_at(t), h0p, c0p)     # layer 0, time t
        h1n, c1n = cell1(h0_prev, h1p, c1p)      # layer 1, time t-1 (independent)
        return (h0n, c0n, h1n, c1n, h0n)

    # Full unroll is right at T=8; cap the unroll (e.g. 8) if T grows.
    h0c, c0c, h1c, c1c, h0_pipe = lax.fori_loop(
        1, T, step, (h0c, c0c, h1c, c1c, h0_pipe), unroll=True)

    # Pipeline epilogue: layer 1 at t = T-1.
    h1_last, _ = cell1(h0_pipe, h1c, c1c)

    # Final Linear on the last top-layer hidden state.
    out_ref[...] = (dotf(h1_last, wlin_ref[...]) + blin_ref[...]).astype(out_ref.dtype)


def _prescale_g(w, h):
    """Scale the g-gate band (columns 2H:3H) by 2 for tanh(x) = 2*sigmoid(2x) - 1."""
    return w.at[..., 2 * h:3 * h].multiply(2.0)


@jax.jit
def lstm_demo_forward(sequences, params, h0, c0):
    """sequences: (B, T, F) batch-first, like the PyTorch module."""
    B, T, F = sequences.shape
    L, _, H = h0.shape
    assert L == 2, "kernel is specialized to num_layers=2"
    P = params["w_lin"].shape[1]

    Bp = ((B + 7) // 8) * 8          # pad batch to a sublane multiple
    pad = Bp - B

    x_tm = jnp.transpose(sequences, (1, 0, 2))           # (T, B, F) time-major
    if pad:
        x_tm = jnp.pad(x_tm, ((0, 0), (0, pad), (0, 0)))
        h0 = jnp.pad(h0, ((0, 0), (0, pad), (0, 0)))
        c0 = jnp.pad(c0, ((0, 0), (0, pad), (0, 0)))
    x_flat = x_tm.reshape(T * Bp, F)

    # Gate-packed (lane-dense 4H last dim) weights; g band pre-scaled by 2.
    # All of this is trace-time array prep, fused/folded by XLA outside the kernel.
    w0 = _prescale_g(params["w_ih0"], H)         # (F, 4H)
    b0 = _prescale_g(params["b0"], H)            # (1, 4H)
    whh0 = _prescale_g(params["w_hh0"], H)       # (H, 4H)
    wih1 = _prescale_g(params["w_ih1"], H)       # (H, 4H)
    whh1 = _prescale_g(params["w_hh1"], H)       # (H, 4H)
    b1 = _prescale_g(params["b1"], H)            # (1, 4H)

    out = pl.pallas_call(
        _lstm_kernel,
        out_shape=jax.ShapeDtypeStruct((Bp, P), jnp.float32),
        scratch_shapes=[pltpu.VMEM((T * Bp, 4 * H), jnp.float32)],
    )(x_flat, h0, c0, w0, b0, whh0, wih1, whh1, b1,
      params["w_lin"], params["b_lin"])
    return out[:B]


def _reference_forward(sequences, params, h0, c0):
    """Pure-JAX reference (lax.scan) with identical math, for validation."""
    B, T, F = sequences.shape
    H = h0.shape[-1]

    def cell(x_in, h_prev, c_prev, wih, whh, b):
        gates = x_in @ wih + h_prev @ whh + b
        i_g = jax.nn.sigmoid(gates[:, 0 * H:1 * H])
        f_g = jax.nn.sigmoid(gates[:, 1 * H:2 * H])
        g_g = jnp.tanh(gates[:, 2 * H:3 * H])
        o_g = jax.nn.sigmoid(gates[:, 3 * H:4 * H])
        c_new = f_g * c_prev + i_g * g_g
        h_new = o_g * jnp.tanh(c_new)
        return h_new, c_new

    def step(carry, x_t):
        (h0_, c0_, h1_, c1_) = carry
        h0n, c0n = cell(x_t, h0_, c0_, params["w_ih0"], params["w_hh0"], params["b0"])
        h1n, c1n = cell(h0n, h1_, c1_, params["w_ih1"], params["w_hh1"], params["b1"])
        return (h0n, c0n, h1n, c1n), h1n

    x_tm = jnp.transpose(sequences, (1, 0, 2))
    carry0 = (h0[0], c0[0], h0[1], c0[1])
    (_, _, h1_last, _), _ = lax.scan(step, carry0, x_tm)
    return h1_last @ params["w_lin"] + params["b_lin"]


def make_params(key, n_features, hidden, n_predictions):
    """Deterministic init mimicking PyTorch uniform(-1/sqrt(H), 1/sqrt(H))."""
    ks = jax.random.split(key, 12)
    k_lstm = 1.0 / jnp.sqrt(hidden)
    u = lambda k, shape, bound: jax.random.uniform(
        k, shape, jnp.float32, -bound, bound)

    # torch stores W_ih as (4H, in); we store the transpose (in, 4H).
    params = {
        "w_ih0": u(ks[0], (n_features, 4 * hidden), k_lstm),
        "w_hh0": u(ks[1], (hidden, 4 * hidden), k_lstm),
        "b0":    u(ks[2], (1, 4 * hidden), k_lstm)
                 + u(ks[3], (1, 4 * hidden), k_lstm),   # b_ih + b_hh
        "w_ih1": u(ks[4], (hidden, 4 * hidden), k_lstm),
        "w_hh1": u(ks[5], (hidden, 4 * hidden), k_lstm),
        "b1":    u(ks[6], (1, 4 * hidden), k_lstm)
                 + u(ks[7], (1, 4 * hidden), k_lstm),
        "w_lin": u(ks[8], (hidden, n_predictions), k_lstm),
        "b_lin": u(ks[9], (1, n_predictions), k_lstm),
    }
    return params, ks[10], ks[11]


if __name__ == "__main__":
    # Small shapes consistent with the module's forward:
    # sequences (batch, seq_len, n_features); 2-layer LSTM, hidden=32, 1 prediction.
    B, T, F, H, L, P = 4, 8, 8, 32, 2, 1

    key = jax.random.PRNGKey(0)
    key, k_x = jax.random.split(key)
    params, k_h, k_c = make_params(key, F, H, P)

    sequences = jax.random.normal(k_x, (B, T, F), jnp.float32)
    h0 = jax.random.normal(k_h, (L, B, H), jnp.float32)   # self.hidden[0]
    c0 = jax.random.normal(k_c, (L, B, H), jnp.float32)   # self.hidden[1]

    y_pred = lstm_demo_forward(sequences, params, h0, c0)
    y_pred = jax.block_until_ready(y_pred)

    y_ref = _reference_forward(sequences, params, h0, c0)
    assert y_pred.shape == (B, P)
    assert jnp.allclose(y_pred, y_ref, rtol=1e-4, atol=1e-4), "mismatch vs reference"

    print("KERNEL_OK")
</pallas_src>

<mosaic_0001>
module attributes {stable_mosaic.version = 11 : i64} {
  func.func @_lstm_kernel(%arg0: memref<64x8xf32, #tpu.memory_space<vmem>>, %arg1: memref<2x8x32xf32, #tpu.memory_space<vmem>>, %arg2: memref<2x8x32xf32, #tpu.memory_space<vmem>>, %arg3: memref<8x128xf32, #tpu.memory_space<vmem>>, %arg4: memref<1x128xf32, #tpu.memory_space<vmem>>, %arg5: memref<32x128xf32, #tpu.memory_space<vmem>>, %arg6: memref<32x128xf32, #tpu.memory_space<vmem>>, %arg7: memref<32x128xf32, #tpu.memory_space<vmem>>, %arg8: memref<1x128xf32, #tpu.memory_space<vmem>>, %arg9: memref<32x1xf32, #tpu.memory_space<vmem>>, %arg10: memref<1x1xf32, #tpu.memory_space<vmem>>, %arg11: memref<8x1xf32, #tpu.memory_space<vmem>>, %arg12: memref<64x128xf32, #tpu.memory_space<vmem>>) attributes {dimension_semantics = [], scalar_prefetch = 0 : i64, scratch_operands = 1 : i64, tpu.core_type = #tpu.core_type<tc>} {
    %c0 = arith.constant 0 : index
    %c0_0 = arith.constant 0 : index
    %0 = vector.load %arg0[%c0, %c0_0] : memref<64x8xf32, #tpu.memory_space<vmem>>, vector<64x8xf32>
    %c0_1 = arith.constant 0 : index
    %c0_2 = arith.constant 0 : index
    %1 = vector.load %arg3[%c0_1, %c0_2] : memref<8x128xf32, #tpu.memory_space<vmem>>, vector<8x128xf32>
    %cst = arith.constant dense<0.000000e+00> : vector<64x128xf32>
    %2 = tpu.matmul %0, %1, %cst {dimension_numbers = #tpu.dot_dimension_numbers<[1], [0], [0], [1], [0, 0, 1, 1], [], []>} : vector<64x8xf32>, vector<8x128xf32>, vector<64x128xf32> -> vector<64x128xf32>
    %c0_3 = arith.constant 0 : index
    %c0_4 = arith.constant 0 : index
    %3 = vector.load %arg4[%c0_3, %c0_4] : memref<1x128xf32, #tpu.memory_space<vmem>>, vector<1x128xf32>
    %4 = vector.broadcast %3 : vector<1x128xf32> to vector<64x128xf32>
    %5 = arith.addf %2, %4 : vector<64x128xf32>
    %c0_5 = arith.constant 0 : index
    %c0_6 = arith.constant 0 : index
    %6 = vector.load %arg12[%c0_5, %c0_6] : memref<64x128xf32, #tpu.memory_space<vmem>>, vector<64x128xf32>
    tpu.vector_store %arg12[%c0_5, %c0_6], %5 {strides = array<i32>} : memref<64x128xf32, #tpu.memory_space<vmem>>, vector<64x128xf32>,
    %c0_7 = arith.constant 0 : index
    %c0_8 = arith.constant 0 : index
    %7 = vector.load %arg5[%c0_7, %c0_8] : memref<32x128xf32, #tpu.memory_space<vmem>>, vector<32x128xf32>
    %c0_9 = arith.constant 0 : index
    %c0_10 = arith.constant 0 : index
    %8 = vector.load %arg6[%c0_9, %c0_10] : memref<32x128xf32, #tpu.memory_space<vmem>>, vector<32x128xf32>
    %c0_11 = arith.constant 0 : index
    %c0_12 = arith.constant 0 : index
    %9 = vector.load %arg7[%c0_11, %c0_12] : memref<32x128xf32, #tpu.memory_space<vmem>>, vector<32x128xf32>
    %c0_13 = arith.constant 0 : index
    %c0_14 = arith.constant 0 : index
    %10 = vector.load %arg8[%c0_13, %c0_14] : memref<1x128xf32, #tpu.memory_space<vmem>>, vector<1x128xf32>
    %c0_15 = arith.constant 0 : index
    %c0_16 = arith.constant 0 : index
    %c0_17 = arith.constant 0 : index
    %11 = vector.load %arg1[%c0_15, %c0_16, %c0_17] : memref<2x8x32xf32, #tpu.memory_space<vmem>>, vector<1x8x32xf32>
    %12 = vector.shape_cast %11 : vector<1x8x32xf32> to vector<8x32xf32>
    %c0_18 = arith.constant 0 : index
    %c0_19 = arith.constant 0 : index
    %c0_20 = arith.constant 0 : index
    %13 = vector.load %arg2[%c0_18, %c0_19, %c0_20] : memref<2x8x32xf32, #tpu.memory_space<vmem>>, vector<1x8x32xf32>
    %14 = vector.shape_cast %13 : vector<1x8x32xf32> to vector<8x32xf32>
    %c1 = arith.constant 1 : index
    %c0_21 = arith.constant 0 : index
    %c0_22 = arith.constant 0 : index
    %15 = vector.load %arg1[%c1, %c0_21, %c0_22] : memref<2x8x32xf32, #tpu.memory_space<vmem>>, vector<1x8x32xf32>
    %16 = vector.shape_cast %15 : vector<1x8x32xf32> to vector<8x32xf32>
    %c1_23 = arith.constant 1 : index
    %c0_24 = arith.constant 0 : index
    %c0_25 = arith.constant 0 : index
    %17 = vector.load %arg2[%c1_23, %c0_24, %c0_25] : memref<2x8x32xf32, #tpu.memory_space<vmem>>, vector<1x8x32xf32>
    %18 = vector.shape_cast %17 : vector<1x8x32xf32> to vector<8x32xf32>
    %c0_26 = arith.constant 0 : index
    %c0_27 = arith.constant 0 : index
    %19 = vector.load %arg12[%c0_26, %c0_27] : memref<64x128xf32, #tpu.memory_space<vmem>>, vector<8x128xf32>
    %cst_28 = arith.constant dense<0.000000e+00> : vector<8x128xf32>
    %20 = tpu.matmul %12, %7, %cst_28 {dimension_numbers = #tpu.dot_dimension_numbers<[1], [0], [0], [1], [0, 0, 1, 1], [], []>} : vector<8x32xf32>, vector<32x128xf32>, vector<8x128xf32> -> vector<8x128xf32>
    %21 = arith.addf %19, %20 : vector<8x128xf32>
    %22 = arith.negf %21 : vector<8x128xf32>
    %23 = math.exp %22 : vector<8x128xf32>
    %cst_29 = arith.constant 1.000000e+00 : f32
    %24 = vector.broadcast %cst_29 : f32 to vector<8x128xf32>
    %25 = arith.addf %24, %23 : vector<8x128xf32>
    %26 = arith.divf %24, %25 : vector<8x128xf32>
    %27 = vector.extract_strided_slice %26 {offsets = [0, 0], sizes = [8, 32], strides = [1, 1]} : vector<8x128xf32> to vector<8x32xf32>
    %28 = vector.extract_strided_slice %26 {offsets = [0, 32], sizes = [8, 32], strides = [1, 1]} : vector<8x128xf32> to vector<8x32xf32>
    %29 = vector.extract_strided_slice %26 {offsets = [0, 64], sizes = [8, 32], strides = [1, 1]} : vector<8x128xf32> to vector<8x32xf32>
    %cst_30 = arith.constant 2.000000e+00 : f32
    %30 = vector.broadcast %cst_30 : f32 to vector<8x32xf32>
    %31 = arith.mulf %30, %29 : vector<8x32xf32>
    %cst_31 = arith.constant 1.000000e+00 : f32
    %32 = vector.broadcast %cst_31 : f32 to vector<8x32xf32>
    %33 = arith.subf %31, %32 : vector<8x32xf32>
    %34 = vector.extract_strided_slice %26 {offsets = [0, 96], sizes = [8, 32], strides = [1, 1]} : vector<8x128xf32> to vector<8x32xf32>
    %35 = arith.mulf %28, %14 : vector<8x32xf32>
    %36 = arith.mulf %27, %33 : vector<8x32xf32>
    %37 = arith.addf %35, %36 : vector<8x32xf32>
    %38 = math.tanh %37 : vector<8x32xf32>
    %39 = arith.mulf %34, %38 : vector<8x32xf32>
    %c1_i32 = arith.constant 1 : i32
    %c8_i32 = arith.constant 8 : i32
    %40 = arith.muli %c1_i32, %c8_i32 : i32
    %41 = tpu.assume_multiple %40, 8 : i32
    %42 = arith.index_cast %41 : i32 to index
    %c0_32 = arith.constant 0 : index
    %43 = vector.load %arg12[%42, %c0_32] : memref<64x128xf32, #tpu.memory_space<vmem>>, vector<8x128xf32>
    %cst_33 = arith.constant dense<0.000000e+00> : vector<8x128xf32>
    %44 = tpu.matmul %39, %7, %cst_33 {dimension_numbers = #tpu.dot_dimension_numbers<[1], [0], [0], [1], [0, 0, 1, 1], [], []>} : vector<8x32xf32>, vector<32x128xf32>, vector<8x128xf32> -> vector<8x128xf32>
    %45 = arith.addf %43, %44 : vector<8x128xf32>
    %46 = arith.negf %45 : vector<8x128xf32>
    %47 = math.exp %46 : vector<8x128xf32>
    %cst_34 = arith.constant 1.000000e+00 : f32
    %48 = vector.broadcast %cst_34 : f32 to vector<8x128xf32>
    %49 = arith.addf %48, %47 : vector<8x128xf32>
    %50 = arith.divf %48, %49 : vector<8x128xf32>
    %51 = vector.extract_strided_slice %50 {offsets = [0, 0], sizes = [8, 32], strides = [1, 1]} : vector<8x128xf32> to vector<8x32xf32>
    %52 = vector.extract_strided_slice %50 {offsets = [0, 32], sizes = [8, 32], strides = [1, 1]} : vector<8x128xf32> to vector<8x32xf32>
    %53 = vector.extract_strided_slice %50 {offsets = [0, 64], sizes = [8, 32], strides = [1, 1]} : vector<8x128xf32> to vector<8x32xf32>
    %cst_35 = arith.constant 2.000000e+00 : f32
    %54 = vector.broadcast %cst_35 : f32 to vector<8x32xf32>
    %55 = arith.mulf %54, %53 : vector<8x32xf32>
    %cst_36 = arith.constant 1.000000e+00 : f32
    %56 = vector.broadcast %cst_36 : f32 to vector<8x32xf32>
    %57 = arith.subf %55, %56 : vector<8x32xf32>
    %58 = vector.extract_strided_slice %50 {offsets = [0, 96], sizes = [8, 32], strides = [1, 1]} : vector<8x128xf32> to vector<8x32xf32>
    %59 = arith.mulf %52, %37 : vector<8x32xf32>
    %60 = arith.mulf %51, %57 : vector<8x32xf32>
    %61 = arith.addf %59, %60 : vector<8x32xf32>
    %62 = math.tanh %61 : vector<8x32xf32>
    %63 = arith.mulf %58, %62 : vector<8x32xf32>
    %cst_37 = arith.constant dense<0.000000e+00> : vector<8x128xf32>
    %64 = tpu.matmul %39, %8, %cst_37 {dimension_numbers = #tpu.dot_dimension_numbers<[1], [0], [0], [1], [0, 0, 1, 1], [], []>} : vector<8x32xf32>, vector<32x128xf32>, vector<8x128xf32> -> vector<8x128xf32>
    %cst_38 = arith.constant dense<0.000000e+00> : vector<8x128xf32>
    %65 = tpu.matmul %16, %9, %cst_38 {dimension_numbers = #tpu.dot_dimension_numbers<[1], [0], [0], [1], [0, 0, 1, 1], [], []>} : vector<8x32xf32>, vector<32x128xf32>, vector<8x128xf32> -> vector<8x128xf32>
    %66 = arith.addf %64, %65 : vector<8x128xf32>
    %67 = vector.broadcast %10 : vector<1x128xf32> to vector<8x128xf32>
    %68 = arith.addf %66, %67 : vector<8x128xf32>
    %69 = arith.negf %68 : vector<8x128xf32>
    %70 = math.exp %69 : vector<8x128xf32>
    %cst_39 = arith.constant 1.000000e+00 : f32
    %71 = vector.broadcast %cst_39 : f32 to vector<8x128xf32>
    %72 = arith.addf %71, %70 : vector<8x128xf32>
    %73 = arith.divf %71, %72 : vector<8x128xf32>
    %74 = vector.extract_strided_slice %73 {offsets = [0, 0], sizes = [8, 32], strides = [1, 1]} : vector<8x128xf32> to vector<8x32xf32>
    %75 = vector.extract_strided_slice %73 {offsets = [0, 32], sizes = [8, 32], strides = [1, 1]} : vector<8x128xf32> to vector<8x32xf32>
    %76 = vector.extract_strided_slice %73 {offsets = [0, 64], sizes = [8, 32], strides = [1, 1]} : vector<8x128xf32> to vector<8x32xf32>
    %cst_40 = arith.constant 2.000000e+00 : f32
    %77 = vector.broadcast %cst_40 : f32 to vector<8x32xf32>
    %78 = arith.mulf %77, %76 : vector<8x32xf32>
    %cst_41 = arith.constant 1.000000e+00 : f32
    %79 = vector.broadcast %cst_41 : f32 to vector<8x32xf32>
    %80 = arith.subf %78, %79 : vector<8x32xf32>
    %81 = vector.extract_strided_slice %73 {offsets = [0, 96], sizes = [8, 32], strides = [1, 1]} : vector<8x128xf32> to vector<8x32xf32>
    %82 = arith.mulf %75, %18 : vector<8x32xf32>
    %83 = arith.mulf %74, %80 : vector<8x32xf32>
    %84 = arith.addf %82, %83 : vector<8x32xf32>
    %85 = math.tanh %84 : vector<8x32xf32>
    %86 = arith.mulf %81, %85 : vector<8x32xf32>
    %c2_i32 = arith.constant 2 : i32
    %c8_i32_42 = arith.constant 8 : i32
    %87 = arith.muli %c2_i32, %c8_i32_42 : i32
    %88 = tpu.assume_multiple %87, 8 : i32
    %89 = arith.index_cast %88 : i32 to index
    %c0_43 = arith.constant 0 : index
    %90 = vector.load %arg12[%89, %c0_43] : memref<64x128xf32, #tpu.memory_space<vmem>>, vector<8x128xf32>
    %cst_44 = arith.constant dense<0.000000e+00> : vector<8x128xf32>
    %91 = tpu.matmul %63, %7, %cst_44 {dimension_numbers = #tpu.dot_dimension_numbers<[1], [0], [0], [1], [0, 0, 1, 1], [], []>} : vector<8x32xf32>, vector<32x128xf32>, vector<8x128xf32> -> vector<8x128xf32>
    %92 = arith.addf %90, %91 : vector<8x128xf32>
    %93 = arith.negf %92 : vector<8x128xf32>
    %94 = math.exp %93 : vector<8x128xf32>
    %cst_45 = arith.constant 1.000000e+00 : f32
    %95 = vector.broadcast %cst_45 : f32 to vector<8x128xf32>
    %96 = arith.addf %95, %94 : vector<8x128xf32>
    %97 = arith.divf %95, %96 : vector<8x128xf32>
    %98 = vector.extract_strided_slice %97 {offsets = [0, 0], sizes = [8, 32], strides = [1, 1]} : vector<8x128xf32> to vector<8x32xf32>
    %99 = vector.extract_strided_slice %97 {offsets = [0, 32], sizes = [8, 32], strides = [1, 1]} : vector<8x128xf32> to vector<8x32xf32>
    %100 = vector.extract_strided_slice %97 {offsets = [0, 64], sizes = [8, 32], strides = [1, 1]} : vector<8x128xf32> to vector<8x32xf32>
    %cst_46 = arith.constant 2.000000e+00 : f32
    %101 = vector.broadcast %cst_46 : f32 to vector<8x32xf32>
    %102 = arith.mulf %101, %100 : vector<8x32xf32>
    %cst_47 = arith.constant 1.000000e+00 : f32
    %103 = vector.broadcast %cst_47 : f32 to vector<8x32xf32>
    %104 = arith.subf %102, %103 : vector<8x32xf32>
    %105 = vector.extract_strided_slice %97 {offsets = [0, 96], sizes = [8, 32], strides = [1, 1]} : vector<8x128xf32> to vector<8x32xf32>
    %106 = arith.mulf %99, %61 : vector<8x32xf32>
    %107 = arith.mulf %98, %104 : vector<8x32xf32>
    %108 = arith.addf %106, %107 : vector<8x32xf32>
    %109 = math.tanh %108 : vector<8x32xf32>
    %110 = arith.mulf %105, %109 : vector<8x32xf32>
    %cst_48 = arith.constant dense<0.000000e+00> : vector<8x128xf32>
    %111 = tpu.matmul %63, %8, %cst_48 {dimension_numbers = #tpu.dot_dimension_numbers<[1], [0], [0], [1], [0, 0, 1, 1], [], []>} : vector<8x32xf32>, vector<32x128xf32>, vector<8x128xf32> -> vector<8x128xf32>
    %cst_49 = arith.constant dense<0.000000e+00> : vector<8x128xf32>
    %112 = tpu.matmul %86, %9, %cst_49 {dimension_numbers = #tpu.dot_dimension_numbers<[1], [0], [0], [1], [0, 0, 1, 1], [], []>} : vector<8x32xf32>, vector<32x128xf32>, vector<8x128xf32> -> vector<8x128xf32>
    %113 = arith.addf %111, %112 : vector<8x128xf32>
    %114 = vector.broadcast %10 : vector<1x128xf32> to vector<8x128xf32>
    %115 = arith.addf %113, %114 : vector<8x128xf32>
    %116 = arith.negf %115 : vector<8x128xf32>
    %117 = math.exp %116 : vector<8x128xf32>
    %cst_50 = arith.constant 1.000000e+00 : f32
    %118 = vector.broadcast %cst_50 : f32 to vector<8x128xf32>
    %119 = arith.addf %118, %117 : vector<8x128xf32>
    %120 = arith.divf %118, %119 : vector<8x128xf32>
    %121 = vector.extract_strided_slice %120 {offsets = [0, 0], sizes = [8, 32], strides = [1, 1]} : vector<8x128xf32> to vector<8x32xf32>
    %122 = vector.extract_strided_slice %120 {offsets = [0, 32], sizes = [8, 32], strides = [1, 1]} : vector<8x128xf32> to vector<8x32xf32>
    %123 = vector.extract_strided_slice %120 {offsets = [0, 64], sizes = [8, 32], strides = [1, 1]} : vector<8x128xf32> to vector<8x32xf32>
    %cst_51 = arith.constant 2.000000e+00 : f32
    %124 = vector.broadcast %cst_51 : f32 to vector<8x32xf32>
    %125 = arith.mulf %124, %123 : vector<8x32xf32>
    %cst_52 = arith.constant 1.000000e+00 : f32
    %126 = vector.broadcast %cst_52 : f32 to vector<8x32xf32>
    %127 = arith.subf %125, %126 : vector<8x32xf32>
    %128 = vector.extract_strided_slice %120 {offsets = [0, 96], sizes = [8, 32], strides = [1, 1]} : vector<8x128xf32> to vector<8x32xf32>
    %129 = arith.mulf %122, %84 : vector<8x32xf32>
    %130 = arith.mulf %121, %127 : vector<8x32xf32>
    %131 = arith.addf %129, %130 : vector<8x32xf32>
    %132 = math.tanh %131 : vector<8x32xf32>
    %133 = arith.mulf %128, %132 : vector<8x32xf32>
    %c3_i32 = arith.constant 3 : i32
    %c8_i32_53 = arith.constant 8 : i32
    %134 = arith.muli %c3_i32, %c8_i32_53 : i32
    %135 = tpu.assume_multiple %134, 8 : i32
    %136 = arith.index_cast %135 : i32 to index
    %c0_54 = arith.constant 0 : index
    %137 = vector.load %arg12[%136, %c0_54] : memref<64x128xf32, #tpu.memory_space<vmem>>, vector<8x128xf32>
    %cst_55 = arith.constant dense<0.000000e+00> : vector<8x128xf32>
    %138 = tpu.matmul %110, %7, %cst_55 {dimension_numbers = #tpu.dot_dimension_numbers<[1], [0], [0], [1], [0, 0, 1, 1], [], []>} : vector<8x32xf32>, vector<32x128xf32>, vector<8x128xf32> -> vector<8x128xf32>
    %139 = arith.addf %137, %138 : vector<8x128xf32>
    %140 = arith.negf %139 : vector<8x128xf32>
    %141 = math.exp %140 : vector<8x128xf32>
    %cst_56 = arith.constant 1.000000e+00 : f32
    %142 = vector.broadcast %cst_56 : f32 to vector<8x128xf32>
    %143 = arith.addf %142, %141 : vector<8x128xf32>
    %144 = arith.divf %142, %143 : vector<8x128xf32>
    %145 = vector.extract_strided_slice %144 {offsets = [0, 0], sizes = [8, 32], strides = [1, 1]} : vector<8x128xf32> to vector<8x32xf32>
    %146 = vector.extract_strided_slice %144 {offsets = [0, 32], sizes = [8, 32], strides = [1, 1]} : vector<8x128xf32> to vector<8x32xf32>
    %147 = vector.extract_strided_slice %144 {offsets = [0, 64], sizes = [8, 32], strides = [1, 1]} : vector<8x128xf32> to vector<8x32xf32>
    %cst_57 = arith.constant 2.000000e+00 : f32
    %148 = vector.broadcast %cst_57 : f32 to vector<8x32xf32>
    %149 = arith.mulf %148, %147 : vector<8x32xf32>
    %cst_58 = arith.constant 1.000000e+00 : f32
    %150 = vector.broadcast %cst_58 : f32 to vector<8x32xf32>
    %151 = arith.subf %149, %150 : vector<8x32xf32>
    %152 = vector.extract_strided_slice %144 {offsets = [0, 96], sizes = [8, 32], strides = [1, 1]} : vector<8x128xf32> to vector<8x32xf32>
    %153 = arith.mulf %146, %108 : vector<8x32xf32>
    %154 = arith.mulf %145, %151 : vector<8x32xf32>
    %155 = arith.addf %153, %154 : vector<8x32xf32>
    %156 = math.tanh %155 : vector<8x32xf32>
    %157 = arith.mulf %152, %156 : vector<8x32xf32>
    %cst_59 = arith.constant dense<0.000000e+00> : vector<8x128xf32>
    %158 = tpu.matmul %110, %8, %cst_59 {dimension_numbers = #tpu.dot_dimension_numbers<[1], [0], [0], [1], [0, 0, 1, 1], [], []>} : vector<8x32xf32>, vector<32x128xf32>, vector<8x128xf32> -> vector<8x128xf32>
    %cst_60 = arith.constant dense<0.000000e+00> : vector<8x128xf32>
    %159 = tpu.matmul %133, %9, %cst_60 {dimension_numbers = #tpu.dot_dimension_numbers<[1], [0], [0], [1], [0, 0, 1, 1], [], []>} : vector<8x32xf32>, vector<32x128xf32>, vector<8x128xf32> -> vector<8x128xf32>
    %160 = arith.addf %158, %159 : vector<8x128xf32>
    %161 = vector.broadcast %10 : vector<1x128xf32> to vector<8x128xf32>
    %162 = arith.addf %160, %161 : vector<8x128xf32>
    %163 = arith.negf %162 : vector<8x128xf32>
    %164 = math.exp %163 : vector<8x128xf32>
    %cst_61 = arith.constant 1.000000e+00 : f32
    %165 = vector.broadcast %cst_61 : f32 to vector<8x128xf32>
    %166 = arith.addf %165, %164 : vector<8x128xf32>
    %167 = arith.divf %165, %166 : vector<8x128xf32>
    %168 = vector.extract_strided_slice %167 {offsets = [0, 0], sizes = [8, 32], strides = [1, 1]} : vector<8x128xf32> to vector<8x32xf32>
    %169 = vector.extract_strided_slice %167 {offsets = [0, 32], sizes = [8, 32], strides = [1, 1]} : vector<8x128xf32> to vector<8x32xf32>
    %170 = vector.extract_strided_slice %167 {offsets = [0, 64], sizes = [8, 32], strides = [1, 1]} : vector<8x128xf32> to vector<8x32xf32>
    %cst_62 = arith.constant 2.000000e+00 : f32
    %171 = vector.broadcast %cst_62 : f32 to vector<8x32xf32>
    %172 = arith.mulf %171, %170 : vector<8x32xf32>
    %cst_63 = arith.constant 1.000000e+00 : f32
    %173 = vector.broadcast %cst_63 : f32 to vector<8x32xf32>
    %174 = arith.subf %172, %173 : vector<8x32xf32>
    %175 = vector.extract_strided_slice %167 {offsets = [0, 96], sizes = [8, 32], strides = [1, 1]} : vector<8x128xf32> to vector<8x32xf32>
    %176 = arith.mulf %169, %131 : vector<8x32xf32>
    %177 = arith.mulf %168, %174 : vector<8x32xf32>
    %178 = arith.addf %176, %177 : vector<8x32xf32>
    %179 = math.tanh %178 : vector<8x32xf32>
    %180 = arith.mulf %175, %179 : vector<8x32xf32>
    %c4_i32 = arith.constant 4 : i32
    %c8_i32_64 = arith.constant 8 : i32
    %181 = arith.muli %c4_i32, %c8_i32_64 : i32
    %182 = tpu.assume_multiple %181, 8 : i32
    %183 = arith.index_cast %182 : i32 to index
    %c0_65 = arith.constant 0 : index
    %184 = vector.load %arg12[%183, %c0_65] : memref<64x128xf32, #tpu.memory_space<vmem>>, vector<8x128xf32>
    %cst_66 = arith.constant dense<0.000000e+00> : vector<8x128xf32>
    %185 = tpu.matmul %157, %7, %cst_66 {dimension_numbers = #tpu.dot_dimension_numbers<[1], [0], [0], [1], [0, 0, 1, 1], [], []>} : vector<8x32xf32>, vector<32x128xf32>, vector<8x128xf32> -> vector<8x128xf32>
    %186 = arith.addf %184, %185 : vector<8x128xf32>
    %187 = arith.negf %186 : vector<8x128xf32>
    %188 = math.exp %187 : vector<8x128xf32>
    %cst_67 = arith.constant 1.000000e+00 : f32
    %189 = vector.broadcast %cst_67 : f32 to vector<8x128xf32>
    %190 = arith.addf %189, %188 : vector<8x128xf32>
    %191 = arith.divf %189, %190 : vector<8x128xf32>
    %192 = vector.extract_strided_slice %191 {offsets = [0, 0], sizes = [8, 32], strides = [1, 1]} : vector<8x128xf32> to vector<8x32xf32>
    %193 = vector.extract_strided_slice %191 {offsets = [0, 32], sizes = [8, 32], strides = [1, 1]} : vector<8x128xf32> to vector<8x32xf32>
    %194 = vector.extract_strided_slice %191 {offsets = [0, 64], sizes = [8, 32], strides = [1, 1]} : vector<8x128xf32> to vector<8x32xf32>
    %cst_68 = arith.constant 2.000000e+00 : f32
    %195 = vector.broadcast %cst_68 : f32 to vector<8x32xf32>
    %196 = arith.mulf %195, %194 : vector<8x32xf32>
    %cst_69 = arith.constant 1.000000e+00 : f32
    %197 = vector.broadcast %cst_69 : f32 to vector<8x32xf32>
    %198 = arith.subf %196, %197 : vector<8x32xf32>
    %199 = vector.extract_strided_slice %191 {offsets = [0, 96], sizes = [8, 32], strides = [1, 1]} : vector<8x128xf32> to vector<8x32xf32>
    %200 = arith.mulf %193, %155 : vector<8x32xf32>
    %201 = arith.mulf %192, %198 : vector<8x32xf32>
    %202 = arith.addf %200, %201 : vector<8x32xf32>
    %203 = math.tanh %202 : vector<8x32xf32>
    %204 = arith.mulf %199, %203 : vector<8x32xf32>
    %cst_70 = arith.constant dense<0.000000e+00> : vector<8x128xf32>
    %205 = tpu.matmul %157, %8, %cst_70 {dimension_numbers = #tpu.dot_dimension_numbers<[1], [0], [0], [1], [0, 0, 1, 1], [], []>} : vector<8x32xf32>, vector<32x128xf32>, vector<8x128xf32> -> vector<8x128xf32>
    %cst_71 = arith.constant dense<0.000000e+00> : vector<8x128xf32>
    %206 = tpu.matmul %180, %9, %cst_71 {dimension_numbers = #tpu.dot_dimension_numbers<[1], [0], [0], [1], [0, 0, 1, 1], [], []>} : vector<8x32xf32>, vector<32x128xf32>, vector<8x128xf32> -> vector<8x128xf32>
    %207 = arith.addf %205, %206 : vector<8x128xf32>
    %208 = vector.broadcast %10 : vector<1x128xf32> to vector<8x128xf32>
    %209 = arith.addf %207, %208 : vector<8x128xf32>
    %210 = arith.negf %209 : vector<8x128xf32>
    %211 = math.exp %210 : vector<8x128xf32>
    %cst_72 = arith.constant 1.000000e+00 : f32
    %212 = vector.broadcast %cst_72 : f32 to vector<8x128xf32>
    %213 = arith.addf %212, %211 : vector<8x128xf32>
    %214 = arith.divf %212, %213 : vector<8x128xf32>
    %215 = vector.extract_strided_slice %214 {offsets = [0, 0], sizes = [8, 32], strides = [1, 1]} : vector<8x128xf32> to vector<8x32xf32>
    %216 = vector.extract_strided_slice %214 {offsets = [0, 32], sizes = [8, 32], strides = [1, 1]} : vector<8x128xf32> to vector<8x32xf32>
    %217 = vector.extract_strided_slice %214 {offsets = [0, 64], sizes = [8, 32], strides = [1, 1]} : vector<8x128xf32> to vector<8x32xf32>
    %cst_73 = arith.constant 2.000000e+00 : f32
    %218 = vector.broadcast %cst_73 : f32 to vector<8x32xf32>
    %219 = arith.mulf %218, %217 : vector<8x32xf32>
    %cst_74 = arith.constant 1.000000e+00 : f32
    %220 = vector.broadcast %cst_74 : f32 to vector<8x32xf32>
    %221 = arith.subf %219, %220 : vector<8x32xf32>
    %222 = vector.extract_strided_slice %214 {offsets = [0, 96], sizes = [8, 32], strides = [1, 1]} : vector<8x128xf32> to vector<8x32xf32>
    %223 = arith.mulf %216, %178 : vector<8x32xf32>
    %224 = arith.mulf %215, %221 : vector<8x32xf32>
    %225 = arith.addf %223, %224 : vector<8x32xf32>
    %226 = math.tanh %225 : vector<8x32xf32>
    %227 = arith.mulf %222, %226 : vector<8x32xf32>
    %c5_i32 = arith.constant 5 : i32
    %c8_i32_75 = arith.constant 8 : i32
    %228 = arith.muli %c5_i32, %c8_i32_75 : i32
    %229 = tpu.assume_multiple %228, 8 : i32
    %230 = arith.index_cast %229 : i32 to index
    %c0_76 = arith.constant 0 : index
    %231 = vector.load %arg12[%230, %c0_76] : memref<64x128xf32, #tpu.memory_space<vmem>>, vector<8x128xf32>
    %cst_77 = arith.constant dense<0.000000e+00> : vector<8x128xf32>
    %232 = tpu.matmul %204, %7, %cst_77 {dimension_numbers = #tpu.dot_dimension_numbers<[1], [0], [0], [1], [0, 0, 1, 1], [], []>} : vector<8x32xf32>, vector<32x128xf32>, vector<8x128xf32> -> vector<8x128xf32>
    %233 = arith.addf %231, %232 : vector<8x128xf32>
    %234 = arith.negf %233 : vector<8x128xf32>
    %235 = math.exp %234 : vector<8x128xf32>
    %cst_78 = arith.constant 1.000000e+00 : f32
    %236 = vector.broadcast %cst_78 : f32 to vector<8x128xf32>
    %237 = arith.addf %236, %235 : vector<8x128xf32>
    %238 = arith.divf %236, %237 : vector<8x128xf32>
    %239 = vector.extract_strided_slice %238 {offsets = [0, 0], sizes = [8, 32], strides = [1, 1]} : vector<8x128xf32> to vector<8x32xf32>
    %240 = vector.extract_strided_slice %238 {offsets = [0, 32], sizes = [8, 32], strides = [1, 1]} : vector<8x128xf32> to vector<8x32xf32>
    %241 = vector.extract_strided_slice %238 {offsets = [0, 64], sizes = [8, 32], strides = [1, 1]} : vector<8x128xf32> to vector<8x32xf32>
    %cst_79 = arith.constant 2.000000e+00 : f32
    %242 = vector.broadcast %cst_79 : f32 to vector<8x32xf32>
    %243 = arith.mulf %242, %241 : vector<8x32xf32>
    %cst_80 = arith.constant 1.000000e+00 : f32
    %244 = vector.broadcast %cst_80 : f32 to vector<8x32xf32>
    %245 = arith.subf %243, %244 : vector<8x32xf32>
    %246 = vector.extract_strided_slice %238 {offsets = [0, 96], sizes = [8, 32], strides = [1, 1]} : vector<8x128xf32> to vector<8x32xf32>
    %247 = arith.mulf %240, %202 : vector<8x32xf32>
    %248 = arith.mulf %239, %245 : vector<8x32xf32>
    %249 = arith.addf %247, %248 : vector<8x32xf32>
    %250 = math.tanh %249 : vector<8x32xf32>
    %251 = arith.mulf %246, %250 : vector<8x32xf32>
    %cst_81 = arith.constant dense<0.000000e+00> : vector<8x128xf32>
    %252 = tpu.matmul %204, %8, %cst_81 {dimension_numbers = #tpu.dot_dimension_numbers<[1], [0], [0], [1], [0, 0, 1, 1], [], []>} : vector<8x32xf32>, vector<32x128xf32>, vector<8x128xf32> -> vector<8x128xf32>
    %cst_82 = arith.constant dense<0.000000e+00> : vector<8x128xf32>
    %253 = tpu.matmul %227, %9, %cst_82 {dimension_numbers = #tpu.dot_dimension_numbers<[1], [0], [0], [1], [0, 0, 1, 1], [], []>} : vector<8x32xf32>, vector<32x128xf32>, vector<8x128xf32> -> vector<8x128xf32>
    %254 = arith.addf %252, %253 : vector<8x128xf32>
    %255 = vector.broadcast %10 : vector<1x128xf32> to vector<8x128xf32>
    %256 = arith.addf %254, %255 : vector<8x128xf32>
    %257 = arith.negf %256 : vector<8x128xf32>
    %258 = math.exp %257 : vector<8x128xf32>
    %cst_83 = arith.constant 1.000000e+00 : f32
    %259 = vector.broadcast %cst_83 : f32 to vector<8x128xf32>
    %260 = arith.addf %259, %258 : vector<8x128xf32>
    %261 = arith.divf %259, %260 : vector<8x128xf32>
    %262 = vector.extract_strided_slice %261 {offsets = [0, 0], sizes = [8, 32], strides = [1, 1]} : vector<8x128xf32> to vector<8x32xf32>
    %263 = vector.extract_strided_slice %261 {offsets = [0, 32], sizes = [8, 32], strides = [1, 1]} : vector<8x128xf32> to vector<8x32xf32>
    %264 = vector.extract_strided_slice %261 {offsets = [0, 64], sizes = [8, 32], strides = [1, 1]} : vector<8x128xf32> to vector<8x32xf32>
    %cst_84 = arith.constant 2.000000e+00 : f32
    %265 = vector.broadcast %cst_84 : f32 to vector<8x32xf32>
    %266 = arith.mulf %265, %264 : vector<8x32xf32>
    %cst_85 = arith.constant 1.000000e+00 : f32
    %267 = vector.broadcast %cst_85 : f32 to vector<8x32xf32>
    %268 = arith.subf %266, %267 : vector<8x32xf32>
    %269 = vector.extract_strided_slice %261 {offsets = [0, 96], sizes = [8, 32], strides = [1, 1]} : vector<8x128xf32> to vector<8x32xf32>
    %270 = arith.mulf %263, %225 : vector<8x32xf32>
    %271 = arith.mulf %262, %268 : vector<8x32xf32>
    %272 = arith.addf %270, %271 : vector<8x32xf32>
    %273 = math.tanh %272 : vector<8x32xf32>
    %274 = arith.mulf %269, %273 : vector<8x32xf32>
    %c6_i32 = arith.constant 6 : i32
    %c8_i32_86 = arith.constant 8 : i32
    %275 = arith.muli %c6_i32, %c8_i32_86 : i32
    %276 = tpu.assume_multiple %275, 8 : i32
    %277 = arith.index_cast %276 : i32 to index
    %c0_87 = arith.constant 0 : index
    %278 = vector.load %arg12[%277, %c0_87] : memref<64x128xf32, #tpu.memory_space<vmem>>, vector<8x128xf32>
    %cst_88 = arith.constant dense<0.000000e+00> : vector<8x128xf32>
    %279 = tpu.matmul %251, %7, %cst_88 {dimension_numbers = #tpu.dot_dimension_numbers<[1], [0], [0], [1], [0, 0, 1, 1], [], []>} : vector<8x32xf32>, vector<32x128xf32>, vector<8x128xf32> -> vector<8x128xf32>
    %280 = arith.addf %278, %279 : vector<8x128xf32>
    %281 = arith.negf %280 : vector<8x128xf32>
    %282 = math.exp %281 : vector<8x128xf32>
    %cst_89 = arith.constant 1.000000e+00 : f32
    %283 = vector.broadcast %cst_89 : f32 to vector<8x128xf32>
    %284 = arith.addf %283, %282 : vector<8x128xf32>
    %285 = arith.divf %283, %284 : vector<8x128xf32>
    %286 = vector.extract_strided_slice %285 {offsets = [0, 0], sizes = [8, 32], strides = [1, 1]} : vector<8x128xf32> to vector<8x32xf32>
    %287 = vector.extract_strided_slice %285 {offsets = [0, 32], sizes = [8, 32], strides = [1, 1]} : vector<8x128xf32> to vector<8x32xf32>
    %288 = vector.extract_strided_slice %285 {offsets = [0, 64], sizes = [8, 32], strides = [1, 1]} : vector<8x128xf32> to vector<8x32xf32>
    %cst_90 = arith.constant 2.000000e+00 : f32
    %289 = vector.broadcast %cst_90 : f32 to vector<8x32xf32>
    %290 = arith.mulf %289, %288 : vector<8x32xf32>
    %cst_91 = arith.constant 1.000000e+00 : f32
    %291 = vector.broadcast %cst_91 : f32 to vector<8x32xf32>
    %292 = arith.subf %290, %291 : vector<8x32xf32>
    %293 = vector.extract_strided_slice %285 {offsets = [0, 96], sizes = [8, 32], strides = [1, 1]} : vector<8x128xf32> to vector<8x32xf32>
    %294 = arith.mulf %287, %249 : vector<8x32xf32>
    %295 = arith.mulf %286, %292 : vector<8x32xf32>
    %296 = arith.addf %294, %295 : vector<8x32xf32>
    %297 = math.tanh %296 : vector<8x32xf32>
    %298 = arith.mulf %293, %297 : vector<8x32xf32>
    %cst_92 = arith.constant dense<0.000000e+00> : vector<8x128xf32>
    %299 = tpu.matmul %251, %8, %cst_92 {dimension_numbers = #tpu.dot_dimension_numbers<[1], [0], [0], [1], [0, 0, 1, 1], [], []>} : vector<8x32xf32>, vector<32x128xf32>, vector<8x128xf32> -> vector<8x128xf32>
    %cst_93 = arith.constant dense<0.000000e+00> : vector<8x128xf32>
    %300 = tpu.matmul %274, %9, %cst_93 {dimension_numbers = #tpu.dot_dimension_numbers<[1], [0], [0], [1], [0, 0, 1, 1], [], []>} : vector<8x32xf32>, vector<32x128xf32>, vector<8x128xf32> -> vector<8x128xf32>
    %301 = arith.addf %299, %300 : vector<8x128xf32>
    %302 = vector.broadcast %10 : vector<1x128xf32> to vector<8x128xf32>
    %303 = arith.addf %301, %302 : vector<8x128xf32>
    %304 = arith.negf %303 : vector<8x128xf32>
    %305 = math.exp %304 : vector<8x128xf32>
    %cst_94 = arith.constant 1.000000e+00 : f32
    %306 = vector.broadcast %cst_94 : f32 to vector<8x128xf32>
    %307 = arith.addf %306, %305 : vector<8x128xf32>
    %308 = arith.divf %306, %307 : vector<8x128xf32>
    %309 = vector.extract_strided_slice %308 {offsets = [0, 0], sizes = [8, 32], strides = [1, 1]} : vector<8x128xf32> to vector<8x32xf32>
    %310 = vector.extract_strided_slice %308 {offsets = [0, 32], sizes = [8, 32], strides = [1, 1]} : vector<8x128xf32> to vector<8x32xf32>
    %311 = vector.extract_strided_slice %308 {offsets = [0, 64], sizes = [8, 32], strides = [1, 1]} : vector<8x128xf32> to vector<8x32xf32>
    %cst_95 = arith.constant 2.000000e+00 : f32
    %312 = vector.broadcast %cst_95 : f32 to vector<8x32xf32>
    %313 = arith.mulf %312, %311 : vector<8x32xf32>
    %cst_96 = arith.constant 1.000000e+00 : f32
    %314 = vector.broadcast %cst_96 : f32 to vector<8x32xf32>
    %315 = arith.subf %313, %314 : vector<8x32xf32>
    %316 = vector.extract_strided_slice %308 {offsets = [0, 96], sizes = [8, 32], strides = [1, 1]} : vector<8x128xf32> to vector<8x32xf32>
    %317 = arith.mulf %310, %272 : vector<8x32xf32>
    %318 = arith.mulf %309, %315 : vector<8x32xf32>
    %319 = arith.addf %317, %318 : vector<8x32xf32>
    %320 = math.tanh %319 : vector<8x32xf32>
    %321 = arith.mulf %316, %320 : vector<8x32xf32>
    %c7_i32 = arith.constant 7 : i32
    %c8_i32_97 = arith.constant 8 : i32
    %322 = arith.muli %c7_i32, %c8_i32_97 : i32
    %323 = tpu.assume_multiple %322, 8 : i32
    %324 = arith.index_cast %323 : i32 to index
    %c0_98 = arith.constant 0 : index
    %325 = vector.load %arg12[%324, %c0_98] : memref<64x128xf32, #tpu.memory_space<vmem>>, vector<8x128xf32>
    %cst_99 = arith.constant dense<0.000000e+00> : vector<8x128xf32>
    %326 = tpu.matmul %298, %7, %cst_99 {dimension_numbers = #tpu.dot_dimension_numbers<[1], [0], [0], [1], [0, 0, 1, 1], [], []>} : vector<8x32xf32>, vector<32x128xf32>, vector<8x128xf32> -> vector<8x128xf32>
    %327 = arith.addf %325, %326 : vector<8x128xf32>
    %328 = arith.negf %327 : vector<8x128xf32>
    %329 = math.exp %328 : vector<8x128xf32>
    %cst_100 = arith.constant 1.000000e+00 : f32
    %330 = vector.broadcast %cst_100 : f32 to vector<8x128xf32>
    %331 = arith.addf %330, %329 : vector<8x128xf32>
    %332 = arith.divf %330, %331 : vector<8x128xf32>
    %333 = vector.extract_strided_slice %332 {offsets = [0, 0], sizes = [8, 32], strides = [1, 1]} : vector<8x128xf32> to vector<8x32xf32>
    %334 = vector.extract_strided_slice %332 {offsets = [0, 32], sizes = [8, 32], strides = [1, 1]} : vector<8x128xf32> to vector<8x32xf32>
    %335 = vector.extract_strided_slice %332 {offsets = [0, 64], sizes = [8, 32], strides = [1, 1]} : vector<8x128xf32> to vector<8x32xf32>
    %cst_101 = arith.constant 2.000000e+00 : f32
    %336 = vector.broadcast %cst_101 : f32 to vector<8x32xf32>
    %337 = arith.mulf %336, %335 : vector<8x32xf32>
    %cst_102 = arith.constant 1.000000e+00 : f32
    %338 = vector.broadcast %cst_102 : f32 to vector<8x32xf32>
    %339 = arith.subf %337, %338 : vector<8x32xf32>
    %340 = vector.extract_strided_slice %332 {offsets = [0, 96], sizes = [8, 32], strides = [1, 1]} : vector<8x128xf32> to vector<8x32xf32>
    %341 = arith.mulf %334, %296 : vector<8x32xf32>
    %342 = arith.mulf %333, %339 : vector<8x32xf32>
    %343 = arith.addf %341, %342 : vector<8x32xf32>
    %344 = math.tanh %343 : vector<8x32xf32>
    %345 = arith.mulf %340, %344 : vector<8x32xf32>
    %cst_103 = arith.constant dense<0.000000e+00> : vector<8x128xf32>
    %346 = tpu.matmul %298, %8, %cst_103 {dimension_numbers = #tpu.dot_dimension_numbers<[1], [0], [0], [1], [0, 0, 1, 1], [], []>} : vector<8x32xf32>, vector<32x128xf32>, vector<8x128xf32> -> vector<8x128xf32>
    %cst_104 = arith.constant dense<0.000000e+00> : vector<8x128xf32>
    %347 = tpu.matmul %321, %9, %cst_104 {dimension_numbers = #tpu.dot_dimension_numbers<[1], [0], [0], [1], [0, 0, 1, 1], [], []>} : vector<8x32xf32>, vector<32x128xf32>, vector<8x128xf32> -> vector<8x128xf32>
    %348 = arith.addf %346, %347 : vector<8x128xf32>
    %349 = vector.broadcast %10 : vector<1x128xf32> to vector<8x128xf32>
    %350 = arith.addf %348, %349 : vector<8x128xf32>
    %351 = arith.negf %350 : vector<8x128xf32>
    %352 = math.exp %351 : vector<8x128xf32>
    %cst_105 = arith.constant 1.000000e+00 : f32
    %353 = vector.broadcast %cst_105 : f32 to vector<8x128xf32>
    %354 = arith.addf %353, %352 : vector<8x128xf32>
    %355 = arith.divf %353, %354 : vector<8x128xf32>
    %356 = vector.extract_strided_slice %355 {offsets = [0, 0], sizes = [8, 32], strides = [1, 1]} : vector<8x128xf32> to vector<8x32xf32>
    %357 = vector.extract_strided_slice %355 {offsets = [0, 32], sizes = [8, 32], strides = [1, 1]} : vector<8x128xf32> to vector<8x32xf32>
    %358 = vector.extract_strided_slice %355 {offsets = [0, 64], sizes = [8, 32], strides = [1, 1]} : vector<8x128xf32> to vector<8x32xf32>
    %cst_106 = arith.constant 2.000000e+00 : f32
    %359 = vector.broadcast %cst_106 : f32 to vector<8x32xf32>
    %360 = arith.mulf %359, %358 : vector<8x32xf32>
    %cst_107 = arith.constant 1.000000e+00 : f32
    %361 = vector.broadcast %cst_107 : f32 to vector<8x32xf32>
    %362 = arith.subf %360, %361 : vector<8x32xf32>
    %363 = vector.extract_strided_slice %355 {offsets = [0, 96], sizes = [8, 32], strides = [1, 1]} : vector<8x128xf32> to vector<8x32xf32>
    %364 = arith.mulf %357, %319 : vector<8x32xf32>
    %365 = arith.mulf %356, %362 : vector<8x32xf32>
    %366 = arith.addf %364, %365 : vector<8x32xf32>
    %367 = math.tanh %366 : vector<8x32xf32>
    %368 = arith.mulf %363, %367 : vector<8x32xf32>
    %c7_i32_108 = arith.constant 7 : i32
    %cst_109 = arith.constant dense<0.000000e+00> : vector<8x128xf32>
    %369 = tpu.matmul %345, %8, %cst_109 {dimension_numbers = #tpu.dot_dimension_numbers<[1], [0], [0], [1], [0, 0, 1, 1], [], []>} : vector<8x32xf32>, vector<32x128xf32>, vector<8x128xf32> -> vector<8x128xf32>
    %cst_110 = arith.constant dense<0.000000e+00> : vector<8x128xf32>
    %370 = tpu.matmul %368, %9, %cst_110 {dimension_numbers = #tpu.dot_dimension_numbers<[1], [0], [0], [1], [0, 0, 1, 1], [], []>} : vector<8x32xf32>, vector<32x128xf32>, vector<8x128xf32> -> vector<8x128xf32>
    %371 = arith.addf %369, %370 : vector<8x128xf32>
    %372 = vector.broadcast %10 : vector<1x128xf32> to vector<8x128xf32>
    %373 = arith.addf %371, %372 : vector<8x128xf32>
    %374 = arith.negf %373 : vector<8x128xf32>
    %375 = math.exp %374 : vector<8x128xf32>
    %cst_111 = arith.constant 1.000000e+00 : f32
    %376 = vector.broadcast %cst_111 : f32 to vector<8x128xf32>
    %377 = arith.addf %376, %375 : vector<8x128xf32>
    %378 = arith.divf %376, %377 : vector<8x128xf32>
    %379 = vector.extract_strided_slice %378 {offsets = [0, 0], sizes = [8, 32], strides = [1, 1]} : vector<8x128xf32> to vector<8x32xf32>
    %380 = vector.extract_strided_slice %378 {offsets = [0, 32], sizes = [8, 32], strides = [1, 1]} : vector<8x128xf32> to vector<8x32xf32>
    %381 = vector.extract_strided_slice %378 {offsets = [0, 64], sizes = [8, 32], strides = [1, 1]} : vector<8x128xf32> to vector<8x32xf32>
    %cst_112 = arith.constant 2.000000e+00 : f32
    %382 = vector.broadcast %cst_112 : f32 to vector<8x32xf32>
    %383 = arith.mulf %382, %381 : vector<8x32xf32>
    %cst_113 = arith.constant 1.000000e+00 : f32
    %384 = vector.broadcast %cst_113 : f32 to vector<8x32xf32>
    %385 = arith.subf %383, %384 : vector<8x32xf32>
    %386 = vector.extract_strided_slice %378 {offsets = [0, 96], sizes = [8, 32], strides = [1, 1]} : vector<8x128xf32> to vector<8x32xf32>
    %387 = arith.mulf %380, %366 : vector<8x32xf32>
    %388 = arith.mulf %379, %385 : vector<8x32xf32>
    %389 = arith.addf %387, %388 : vector<8x32xf32>
    %390 = math.tanh %389 : vector<8x32xf32>
    %391 = arith.mulf %386, %390 : vector<8x32xf32>
    %c0_114 = arith.constant 0 : index
    %c0_115 = arith.constant 0 : index
    %392 = vector.load %arg9[%c0_114, %c0_115] : memref<32x1xf32, #tpu.memory_space<vmem>>, vector<32x1xf32>
    %cst_116 = arith.constant dense<0.000000e+00> : vector<8x1xf32>
    %393 = tpu.matmul %391, %392, %cst_116 {dimension_numbers = #tpu.dot_dimension_numbers<[1], [0], [0], [1], [0, 0, 1, 1], [], []>} : vector<8x32xf32>, vector<32x1xf32>, vector<8x1xf32> -> vector<8x1xf32>
    %c0_117 = arith.constant 0 : index
    %c0_118 = arith.constant 0 : index
    %394 = vector.load %arg10[%c0_117, %c0_118] : memref<1x1xf32, #tpu.memory_space<vmem>>, vector<1x1xf32>
    %395 = vector.broadcast %394 : vector<1x1xf32> to vector<8x1xf32>
    %396 = arith.addf %393, %395 : vector<8x1xf32>
    %c0_119 = arith.constant 0 : index
    %c0_120 = arith.constant 0 : index
    %397 = vector.load %arg11[%c0_119, %c0_120] : memref<8x1xf32, #tpu.memory_space<vmem>>, vector<8x1xf32>
    tpu.vector_store %arg11[%c0_119, %c0_120], %396 {strides = array<i32>} : memref<8x1xf32, #tpu.memory_space<vmem>>, vector<8x1xf32>,
    return
  }
}

</mosaic_0001>

<llo_original>
// kernel: lstm_demo_forward.1
$region0: #{lstm_demo_forward.1}
  #allocation0 [shape = 'u32[]', space=smem, size = 0x4, offset = 0x4, fixed_abs, tag = 'smem constant byte address 0x4 - core index']
  #allocation1 [shape = 'u32[72,128]{1,0:T(1,128)}', space=vmem, size = 0x9000, scoped, tag = 'internal scratch']
  #allocation2 [shape = 'f32[64,128]{1,0:T(8,128)}', space=vmem, size = 0x8000, scoped, tag = 'scratch operand']
  #allocation3 [shape = 'f32[1,1]{1,0:T(1,128)S(1)}', space=vmem, size = 0x200, scoped, tag = 'scoped memory for lstm_demo_forward.1']
  %s0 = inlined_call_operand.vmem [shape: f32[64,8], index: 0, kind: input, shape index: {}]
  %s1 = inlined_call_operand.vmem [shape: f32[2,8,32], index: 1, kind: input, shape index: {}]
  %s2 = inlined_call_operand.vmem [shape: f32[2,8,32], index: 2, kind: input, shape index: {}]
  %s3 = inlined_call_operand.vmem [shape: f32[8,128], index: 3, kind: input, shape index: {}]
  %s4 = inlined_call_operand.vmem [shape: f32[1,128], index: 4, kind: input, shape index: {}]
  %s5 = inlined_call_operand.vmem [shape: f32[32,128], index: 5, kind: input, shape index: {}]
  %s6 = inlined_call_operand.vmem [shape: f32[32,128], index: 6, kind: input, shape index: {}]
  %s7 = inlined_call_operand.vmem [shape: f32[32,128], index: 7, kind: input, shape index: {}]
  %s8 = inlined_call_operand.vmem [shape: f32[1,128], index: 8, kind: input, shape index: {}]
  %s9 = inlined_call_operand.vmem [shape: f32[32,1], index: 9, kind: input, shape index: {}]
  %s10 = inlined_call_operand.<no memory space> [shape: f32[1,1], index: 10, kind: input, shape index: {}]
  %s11 = inlined_call_operand.vmem [shape: f32[8,1], index: 11, kind: output, shape index: {}]
  %s12 = sld [smem:[#allocation0]]
  $region54: #{lstm_demo_forward.1} parent=0
    _
  %s14 = ssub.s32 1, %s12
  %s15 = scalar_select 0, %s14, %s12
  %v16 = vstv %s10
  %17 = vst [vmem:[#allocation3] sm:$0x1] %v16
  // Predicated region
  $region2: #{lstm_demo_forward.1} parent=0 // pred_check
    _
  $region3: #{lstm_demo_forward.1} parent=0 // pred_check_branch
    %19 = sbr.rel (0) target = $region5
  $region4: #{lstm_demo_forward.1} parent=0 // pred_region
    _
  $region5: #{lstm_demo_forward.1} parent=0 // pred_fallthru
    _
  // Predicated region
  $region6: #{lstm_demo_forward.1} parent=0 // pred_check
    _
  $region7: #{lstm_demo_forward.1} parent=0 // pred_check_branch
    %21 = sbr.rel (0) target = $region9
  $region8: #{lstm_demo_forward.1} parent=0 // pred_region
    _
  $region9: #{lstm_demo_forward.1} parent=0 // pred_fallthru
    _
  // Predicated region
  $region10: #{lstm_demo_forward.1} parent=0 // pred_check
    _
  $region11: #{lstm_demo_forward.1} parent=0 // pred_check_branch
    %23 = sbr.rel (0) target = $region13
  $region12: #{lstm_demo_forward.1} parent=0 // pred_region
    _
  $region13: #{lstm_demo_forward.1} parent=0 // pred_fallthru
    _
  // Predicated region
  $region14: #{lstm_demo_forward.1} parent=0 // pred_check
    _
  $region15: #{lstm_demo_forward.1} parent=0 // pred_check_branch
    %25 = sbr.rel (0) target = $region17
  $region16: #{lstm_demo_forward.1} parent=0 // pred_region
    _
  $region17: #{lstm_demo_forward.1} parent=0 // pred_fallthru
    _
  // Predicated region
  $region18: #{lstm_demo_forward.1} parent=0 // pred_check
    _
  $region19: #{lstm_demo_forward.1} parent=0 // pred_check_branch
    %27 = sbr.rel (0) target = $region21
  $region20: #{lstm_demo_forward.1} parent=0 // pred_region
    _
  $region21: #{lstm_demo_forward.1} parent=0 // pred_fallthru
    _
  // Predicated region
  $region22: #{lstm_demo_forward.1} parent=0 // pred_check
    _
  $region23: #{lstm_demo_forward.1} parent=0 // pred_check_branch
    %29 = sbr.rel (0) target = $region25
  $region24: #{lstm_demo_forward.1} parent=0 // pred_region
    _
  $region25: #{lstm_demo_forward.1} parent=0 // pred_fallthru
    _
  // Predicated region
  $region26: #{lstm_demo_forward.1} parent=0 // pred_check
    _
  $region27: #{lstm_demo_forward.1} parent=0 // pred_check_branch
    %31 = sbr.rel (0) target = $region29
  $region28: #{lstm_demo_forward.1} parent=0 // pred_region
    _
  $region29: #{lstm_demo_forward.1} parent=0 // pred_fallthru
    _
  // Predicated region
  $region30: #{lstm_demo_forward.1} parent=0 // pred_check
    _
  $region31: #{lstm_demo_forward.1} parent=0 // pred_check_branch
    %33 = sbr.rel (0) target = $region33
  $region32: #{lstm_demo_forward.1} parent=0 // pred_region
    _
  $region33: #{lstm_demo_forward.1} parent=0 // pred_fallthru
    _
  // Predicated region
  $region34: #{lstm_demo_forward.1} parent=0 // pred_check
    _
  $region35: #{lstm_demo_forward.1} parent=0 // pred_check_branch
    %35 = sbr.rel (0) target = $region37
  $region36: #{lstm_demo_forward.1} parent=0 // pred_region
    _
  $region37: #{lstm_demo_forward.1} parent=0 // pred_fallthru
    _
  // Predicated region
  $region38: #{lstm_demo_forward.1} parent=0 // pred_check
    _
  $region39: #{lstm_demo_forward.1} parent=0 // pred_check_branch
    %37 = sbr.rel (0) target = $region41
  $region40: #{lstm_demo_forward.1} parent=0 // pred_region
    _
  $region41: #{lstm_demo_forward.1} parent=0 // pred_fallthru
    _
  // Predicated region
  $region42: #{lstm_demo_forward.1} parent=0 // pred_check
    _
  $region43: #{lstm_demo_forward.1} parent=0 // pred_check_branch
    %39 = sbr.rel (0) target = $region45
  $region44: #{lstm_demo_forward.1} parent=0 // pred_region
    _
  $region45: #{lstm_demo_forward.1} parent=0 // pred_fallthru
    _
  %v40 = vld [vmem:[%s0] sm:$0xff]
  %v41 = vld [vmem:[%s0 + $0x8] sm:$0xff]
  %v42 = vld [vmem:[%s0 + $0x10] sm:$0xff]
  %v43 = vld [vmem:[%s0 + $0x18] sm:$0xff]
  %v44 = vld [vmem:[%s0 + $0x20] sm:$0xff]
  %v45 = vld [vmem:[%s0 + $0x28] sm:$0xff]
  %v46 = vld [vmem:[%s0 + $0x30] sm:$0xff]
  %v47 = vld [vmem:[%s0 + $0x38] sm:$0xff]
  %v48 = vld [vmem:[%s3] sm:$0xff]
  %v49 = vld [vmem:[%s4] sm:$0x1]
  %v51 = vperm.slane %v49, 0
  %vm53 = vcmask 64512
  %v55 = vsel %vm53, %v40, 0
  %v58 = vsel %vm53, %v41, 0
  %v61 = vsel %vm53, %v42, 0
  %v64 = vsel %vm53, %v43, 0
  %v67 = vsel %vm53, %v44, 0
  %v70 = vsel %vm53, %v45, 0
  %v73 = vsel %vm53, %v46, 0
  %v76 = vsel %vm53, %v47, 0
  %78 = vmatpush.msra.mxu0 0.0
  %79 = vmatpush.msra.mxu0 0.0
  %80 = vmatpush.msra.mxu0 0.0
  %81 = vmatpush.msra.mxu0 0.0
  %82 = vmatpush.msra.mxu0 0.0
  %83 = vmatpush.msra.mxu0 0.0
  %84 = vmatpush.msra.mxu0 0.0
  %85 = vmatpush.msra.mxu0 0.0
  %86 = vmatpush.msra.mxu0 0.0
  %87 = vmatpush.msra.mxu0 0.0
  %88 = vmatpush.msra.mxu0 0.0
  %89 = vmatpush.msra.mxu0 0.0
  %90 = vmatpush.msra.mxu0 0.0
  %91 = vmatpush.msra.mxu0 0.0
  %92 = vmatpush.msra.mxu0 0.0
  %93 = vmatpush.msra.mxu0 %v48
  %94 = vmatmul.f32.gmra.mxu0 %v55
  %v95 = vpop.f32.mrf.mxu0
  %v96 = vadd.f32 %v51, %v95
  %97 = vmatmul.f32.gmra.mxu0 %v58
  %v98 = vpop.f32.mrf.mxu0
  %v99 = vadd.f32 %v51, %v98
  %100 = vmatmul.f32.gmra.mxu0 %v61
  %v101 = vpop.f32.mrf.mxu0
  %v102 = vadd.f32 %v51, %v101
  %103 = vmatmul.f32.gmra.mxu0 %v64
  %v104 = vpop.f32.mrf.mxu0
  %v105 = vadd.f32 %v51, %v104
  %106 = vmatmul.f32.gmra.mxu0 %v67
  %v107 = vpop.f32.mrf.mxu0
  %v108 = vadd.f32 %v51, %v107
  %109 = vmatmul.f32.gmra.mxu0 %v70
  %v110 = vpop.f32.mrf.mxu0
  %v111 = vadd.f32 %v51, %v110
  %112 = vmatmul.f32.gmra.mxu0 %v73
  %v113 = vpop.f32.mrf.mxu0
  %v114 = vadd.f32 %v51, %v113
  %115 = vmatmul.f32.gmra.mxu0 %v76
  %v116 = vpop.f32.mrf.mxu0
  %v117 = vadd.f32 %v51, %v116
  %118 = vdwg.mxu0
  %119 = vst [vmem:[#allocation2] sm:$0xff] %v96
  %120 = vst [vmem:[#allocation2 + $0x8] sm:$0xff] %v99
  %121 = vst [vmem:[#allocation2 + $0x10] sm:$0xff] %v102
  %122 = vst [vmem:[#allocation2 + $0x18] sm:$0xff] %v105
  %123 = vst [vmem:[#allocation2 + $0x20] sm:$0xff] %v108
  %124 = vst [vmem:[#allocation2 + $0x28] sm:$0xff] %v111
  %125 = vst [vmem:[#allocation2 + $0x30] sm:$0xff] %v114
  %126 = vst [vmem:[#allocation2 + $0x38] sm:$0xff] %v117
  %v127 = vld [vmem:[%s5] sm:$0xff]
  %v128 = vld [vmem:[%s5 + $0x8] sm:$0xff]
  %v129 = vld [vmem:[%s5 + $0x10] sm:$0xff]
  %v130 = vld [vmem:[%s5 + $0x18] sm:$0xff]
  %v131 = vld [vmem:[%s6] sm:$0xff]
  %v132 = vld [vmem:[%s6 + $0x8] sm:$0xff]
  %v133 = vld [vmem:[%s6 + $0x10] sm:$0xff]
  %v134 = vld [vmem:[%s6 + $0x18] sm:$0xff]
  %v135 = vld [vmem:[%s7] sm:$0xff]
  %v136 = vld [vmem:[%s7 + $0x8] sm:$0xff]
  %v137 = vld [vmem:[%s7 + $0x10] sm:$0xff]
  %v138 = vld [vmem:[%s7 + $0x18] sm:$0xff]
  %v139 = vld [vmem:[%s8] sm:$0x1]
  %v140 = vld [vmem:[%s1] sm:$0xff]
  %v141 = vld [vmem:[%s2] sm:$0xff]
  %s142 = scalar_lea.vmem %s1, 8
  %v143 = vld [vmem:[%s142] sm:$0xff]
  %s144 = scalar_lea.vmem %s2, 8
  %v145 = vld [vmem:[%s144] sm:$0xff]
  %v146 = vld [vmem:[#allocation2] sm:$0xff]
  %vm147 = vcmask 261120
  %v149 = vsel %vm147, %v140, 0
  %151 = vmatpush.msra.mxu0 0.0
  %152 = vmatpush.msra.mxu0 0.0
  %153 = vmatpush.msra.mxu0 0.0
  %154 = vmatpush.msra.mxu0 0.0
  %155 = vmatpush.msra.mxu0 0.0
  %156 = vmatpush.msra.mxu0 0.0
  %157 = vmatpush.msra.mxu0 0.0
  %158 = vmatpush.msra.mxu0 0.0
  %159 = vmatpush.msra.mxu0 0.0
  %160 = vmatpush.msra.mxu0 0.0
  %161 = vmatpush.msra.mxu0 0.0
  %162 = vmatpush.msra.mxu0 0.0
  %163 = vmatpush.msra.mxu0 %v130
  %164 = vmatpush.msra.mxu0 %v129
  %165 = vmatpush.msra.mxu0 %v128
  %166 = vmatpush.msra.mxu0 %v127
  %167 = vmatmul.f32.gmra.mxu0 %v149
  %v168 = vpop.f32.mrf.mxu0
  %v169 = vadd.f32 0.0, %v168
  %170 = vdwg.mxu0
  %v171 = vadd.f32 %v146, %v169
  %v172 = vxor.u32 %v171, 2147483648
  %v173 = vmul.f32 %v172, 1.442695
  %v174 = vpow.pop %v173
  %v175 = vadd.f32 %v174, 1.0
  %v176 = vrcp.pop %v175
  %v177 = vmul.f32 %v175, %v176
  %v178 = vsub.f32 1.0, %v177
  %v179 = vmul.f32 %v176, %v178
  %v180 = vadd.f32 %v176, %v179
  %vm181 = vweird.f32 %v175
  %vm182 = vweird.f32 %v176
  %vm183 = vmor %vm181, %vm182
  %v184 = vsel %vm183, %v176, %v180
  %v185 = vand.u32 2147483647, %v175
  %vm186 = vcmp.eq.f32.partialorder %v185, 8.507059e+37
  %v187 = vand.u32 %v175, 2147483648
  %v188 = vor.u32 1.1754944e-38, %v187
  %v189 = vsel %vm186, %v188, %v184
  %v190 = vmul.f32 1.0, %v189
  %v191 = vmul.f32 %v190, 2.0
  %v192 = vsub.f32 %v191, 1.0
  %194 = vrot.lane.b32.xlu0 %v141, 32
  %v195 = vpop.permute.xlu0 %194
  %v197 = vmul.f32 %v190, %v195
  %199 = vrot.lane.b32.xlu0 %v192, 64
  %v200 = vpop.permute.xlu0 %199
  %v202 = vmul.f32 %v190, %v200
  %204 = vrot.lane.b32.xlu0 %v202, 32
  %v205 = vpop.permute.xlu0 %204
  %v207 = vadd.f32 %v197, %v205
  %v208 = vtanh.pop %v207
  %210 = vrot.lane.b32.xlu0 %v208, 64
  %v211 = vpop.permute.xlu0 %210
  %v213 = vmul.f32 %v190, %v211
  %s214 = scalar_lea.vmem [#allocation2], 8
  %v215 = vld [vmem:[%s214] sm:$0xff]
  %217 = vrot.lane.b32.xlu0 %v213, 32
  %v218 = vpop.permute.xlu0 %217
  %v219 = vsel %vm147, %v218, 0
  %221 = vmatpush.msra.mxu0 0.0
  %222 = vmatpush.msra.mxu0 0.0
  %223 = vmatpush.msra.mxu0 0.0
  %224 = vmatpush.msra.mxu0 0.0
  %225 = vmatpush.msra.mxu0 0.0
  %226 = vmatpush.msra.mxu0 0.0
  %227 = vmatpush.msra.mxu0 0.0
  %228 = vmatpush.msra.mxu0 0.0
  %229 = vmatpush.msra.mxu0 0.0
  %230 = vmatpush.msra.mxu0 0.0
  %231 = vmatpush.msra.mxu0 0.0
  %232 = vmatpush.msra.mxu0 0.0
  %233 = vmatpush.msra.mxu0 %v130
  %234 = vmatpush.msra.mxu0 %v129
  %235 = vmatpush.msra.mxu0 %v128
  %236 = vmatpush.msra.mxu0 %v127
  %237 = vmatmul.f32.gmra.mxu0 %v219
  %v238 = vpop.f32.mrf.mxu0
  %v239 = vadd.f32 0.0, %v238
  %240 = vdwg.mxu0
  %v241 = vadd.f32 %v215, %v239
  %v242 = vxor.u32 %v241, 2147483648
  %v243 = vmul.f32 %v242, 1.442695
  %v244 = vpow.pop %v243
  %v245 = vadd.f32 %v244, 1.0
  %v246 = vrcp.pop %v245
  %v247 = vmul.f32 %v245, %v246
  %v248 = vsub.f32 1.0, %v247
  %v249 = vmul.f32 %v246, %v248
  %v250 = vadd.f32 %v246, %v249
  %vm251 = vweird.f32 %v245
  %vm252 = vweird.f32 %v246
  %vm253 = vmor %vm251, %vm252
  %v254 = vsel %vm253, %v246, %v250
  %v255 = vand.u32 2147483647, %v245
  %vm256 = vcmp.eq.f32.partialorder %v255, 8.507059e+37
  %v257 = vand.u32 %v245, 2147483648
  %v258 = vor.u32 1.1754944e-38, %v257
  %v259 = vsel %vm256, %v258, %v254
  %v260 = vmul.f32 1.0, %v259
  %v261 = vmul.f32 %v260, 2.0
  %v262 = vsub.f32 %v261, 1.0
  %v263 = vmul.f32 %v260, %v207
  %265 = vrot.lane.b32.xlu0 %v262, 64
  %v266 = vpop.permute.xlu0 %265
  %v268 = vmul.f32 %v260, %v266
  %270 = vrot.lane.b32.xlu0 %v268, 32
  %v271 = vpop.permute.xlu0 %270
  %v273 = vadd.f32 %v263, %v271
  %v274 = vtanh.pop %v273
  %276 = vrot.lane.b32.xlu0 %v274, 64
  %v277 = vpop.permute.xlu0 %276
  %v279 = vmul.f32 %v260, %v277
  %v281 = vsel %vm147, %v143, 0
  %283 = vmatpush.msra.mxu0 0.0
  %284 = vmatpush.msra.mxu0 0.0
  %285 = vmatpush.msra.mxu0 0.0
  %286 = vmatpush.msra.mxu0 0.0
  %287 = vmatpush.msra.mxu0 0.0
  %288 = vmatpush.msra.mxu0 0.0
  %289 = vmatpush.msra.mxu0 0.0
  %290 = vmatpush.msra.mxu0 0.0
  %291 = vmatpush.msra.mxu0 0.0
  %292 = vmatpush.msra.mxu0 0.0
  %293 = vmatpush.msra.mxu0 0.0
  %294 = vmatpush.msra.mxu0 0.0
  %295 = vmatpush.msra.mxu0 %v138
  %296 = vmatpush.msra.mxu0 %v137
  %297 = vmatpush.msra.mxu0 %v136
  %298 = vmatpush.msra.mxu0 %v135
  %299 = vmatmul.f32.gmra.mxu0 %v281
  %v300 = vpop.f32.mrf.mxu0
  %v301 = vadd.f32 0.0, %v300
  %302 = vdwg.mxu0
  %303 = vmatpush.msra.mxu0 0.0
  %304 = vmatpush.msra.mxu0 0.0
  %305 = vmatpush.msra.mxu0 0.0
  %306 = vmatpush.msra.mxu0 0.0
  %307 = vmatpush.msra.mxu0 0.0
  %308 = vmatpush.msra.mxu0 0.0
  %309 = vmatpush.msra.mxu0 0.0
  %310 = vmatpush.msra.mxu0 0.0
  %311 = vmatpush.msra.mxu0 0.0
  %312 = vmatpush.msra.mxu0 0.0
  %313 = vmatpush.msra.mxu0 0.0
  %314 = vmatpush.msra.mxu0 0.0
  %315 = vmatpush.msra.mxu0 %v134
  %316 = vmatpush.msra.mxu0 %v133
  %317 = vmatpush.msra.mxu0 %v132
  %318 = vmatpush.msra.mxu0 %v131
  %319 = vmatmul.f32.gmra.mxu0 %v219
  %v320 = vpop.f32.mrf.mxu0
  %v321 = vadd.f32 %v301, %v320
  %322 = vdwg.mxu0
  %v324 = vperm.slane %v139, 0
  %v326 = vadd.f32 %v321, %v324
  %v327 = vxor.u32 %v326, 2147483648
  %v328 = vmul.f32 %v327, 1.442695
  %v329 = vpow.pop %v328
  %v330 = vadd.f32 %v329, 1.0
  %v331 = vrcp.pop %v330
  %v332 = vmul.f32 %v330, %v331
  %v333 = vsub.f32 1.0, %v332
  %v334 = vmul.f32 %v331, %v333
  %v335 = vadd.f32 %v331, %v334
  %vm336 = vweird.f32 %v330
  %vm337 = vweird.f32 %v331
  %vm338 = vmor %vm336, %vm337
  %v339 = vsel %vm338, %v331, %v335
  %v340 = vand.u32 2147483647, %v330
  %vm341 = vcmp.eq.f32.partialorder %v340, 8.507059e+37
  %v342 = vand.u32 %v330, 2147483648
  %v343 = vor.u32 1.1754944e-38, %v342
  %v344 = vsel %vm341, %v343, %v339
  %v345 = vmul.f32 1.0, %v344
  %v346 = vmul.f32 %v345, 2.0
  %v347 = vsub.f32 %v346, 1.0
  %349 = vrot.lane.b32.xlu0 %v145, 32
  %v350 = vpop.permute.xlu0 %349
  %v352 = vmul.f32 %v345, %v350
  %354 = vrot.lane.b32.xlu0 %v347, 64
  %v355 = vpop.permute.xlu0 %354
  %v357 = vmul.f32 %v345, %v355
  %359 = vrot.lane.b32.xlu0 %v357, 32
  %v360 = vpop.permute.xlu0 %359
  %v362 = vadd.f32 %v352, %v360
  %v363 = vtanh.pop %v362
  %365 = vrot.lane.b32.xlu0 %v363, 64
  %v366 = vpop.permute.xlu0 %365
  %v368 = vmul.f32 %v345, %v366
  %s369 = scalar_lea.vmem [#allocation2], 16
  %v370 = vld [vmem:[%s369] sm:$0xff]
  %372 = vrot.lane.b32.xlu0 %v279, 32
  %v373 = vpop.permute.xlu0 %372
  %v374 = vsel %vm147, %v373, 0
  %376 = vmatpush.msra.mxu0 0.0
  %377 = vmatpush.msra.mxu0 0.0
  %378 = vmatpush.msra.mxu0 0.0
  %379 = vmatpush.msra.mxu0 0.0
  %380 = vmatpush.msra.mxu0 0.0
  %381 = vmatpush.msra.mxu0 0.0
  %382 = vmatpush.msra.mxu0 0.0
  %383 = vmatpush.msra.mxu0 0.0
  %384 = vmatpush.msra.mxu0 0.0
  %385 = vmatpush.msra.mxu0 0.0
  %386 = vmatpush.msra.mxu0 0.0
  %387 = vmatpush.msra.mxu0 0.0
  %388 = vmatpush.msra.mxu0 %v130
  %389 = vmatpush.msra.mxu0 %v129
  %390 = vmatpush.msra.mxu0 %v128
  %391 = vmatpush.msra.mxu0 %v127
  %392 = vmatmul.f32.gmra.mxu0 %v374
  %v393 = vpop.f32.mrf.mxu0
  %v394 = vadd.f32 0.0, %v393
  %395 = vdwg.mxu0
  %v396 = vadd.f32 %v370, %v394
  %v397 = vxor.u32 %v396, 2147483648
  %v398 = vmul.f32 %v397, 1.442695
  %v399 = vpow.pop %v398
  %v400 = vadd.f32 %v399, 1.0
  %v401 = vrcp.pop %v400
  %v402 = vmul.f32 %v400, %v401
  %v403 = vsub.f32 1.0, %v402
  %v404 = vmul.f32 %v401, %v403
  %v405 = vadd.f32 %v401, %v404
  %vm406 = vweird.f32 %v400
  %vm407 = vweird.f32 %v401
  %vm408 = vmor %vm406, %vm407
  %v409 = vsel %vm408, %v401, %v405
  %v410 = vand.u32 2147483647, %v400
  %vm411 = vcmp.eq.f32.partialorder %v410, 8.507059e+37
  %v412 = vand.u32 %v400, 2147483648
  %v413 = vor.u32 1.1754944e-38, %v412
  %v414 = vsel %vm411, %v413, %v409
  %v415 = vmul.f32 1.0, %v414
  %v416 = vmul.f32 %v415, 2.0
  %v417 = vsub.f32 %v416, 1.0
  %v418 = vmul.f32 %v415, %v273
  %420 = vrot.lane.b32.xlu0 %v417, 64
  %v421 = vpop.permute.xlu0 %420
  %v423 = vmul.f32 %v415, %v421
  %425 = vrot.lane.b32.xlu0 %v423, 32
  %v426 = vpop.permute.xlu0 %425
  %v428 = vadd.f32 %v418, %v426
  %v429 = vtanh.pop %v428
  %431 = vrot.lane.b32.xlu0 %v429, 64
  %v432 = vpop.permute.xlu0 %431
  %v434 = vmul.f32 %v415, %v432
  %436 = vrot.lane.b32.xlu0 %v368, 32
  %v437 = vpop.permute.xlu0 %436
  %v438 = vsel %vm147, %v437, 0
  %440 = vmatpush.msra.mxu0 0.0
  %441 = vmatpush.msra.mxu0 0.0
  %442 = vmatpush.msra.mxu0 0.0
  %443 = vmatpush.msra.mxu0 0.0
  %444 = vmatpush.msra.mxu0 0.0
  %445 = vmatpush.msra.mxu0 0.0
  %446 = vmatpush.msra.mxu0 0.0
  %447 = vmatpush.msra.mxu0 0.0
  %448 = vmatpush.msra.mxu0 0.0
  %449 = vmatpush.msra.mxu0 0.0
  %450 = vmatpush.msra.mxu0 0.0
  %451 = vmatpush.msra.mxu0 0.0
  %452 = vmatpush.msra.mxu0 %v138
  %453 = vmatpush.msra.mxu0 %v137
  %454 = vmatpush.msra.mxu0 %v136
  %455 = vmatpush.msra.mxu0 %v135
  %456 = vmatmul.f32.gmra.mxu0 %v438
  %v457 = vpop.f32.mrf.mxu0
  %v458 = vadd.f32 0.0, %v457
  %459 = vdwg.mxu0
  %460 = vmatpush.msra.mxu0 0.0
  %461 = vmatpush.msra.mxu0 0.0
  %462 = vmatpush.msra.mxu0 0.0
  %463 = vmatpush.msra.mxu0 0.0
  %464 = vmatpush.msra.mxu0 0.0
  %465 = vmatpush.msra.mxu0 0.0
  %466 = vmatpush.msra.mxu0 0.0
  %467 = vmatpush.msra.mxu0 0.0
  %468 = vmatpush.msra.mxu0 0.0
  %469 = vmatpush.msra.mxu0 0.0
  %470 = vmatpush.msra.mxu0 0.0
  %471 = vmatpush.msra.mxu0 0.0
  %472 = vmatpush.msra.mxu0 %v134
  %473 = vmatpush.msra.mxu0 %v133
  %474 = vmatpush.msra.mxu0 %v132
  %475 = vmatpush.msra.mxu0 %v131
  %476 = vmatmul.f32.gmra.mxu0 %v374
  %v477 = vpop.f32.mrf.mxu0
  %v478 = vadd.f32 %v458, %v477
  %479 = vdwg.mxu0
  %v480 = vadd.f32 %v478, %v324
  %v481 = vxor.u32 %v480, 2147483648
  %v482 = vmul.f32 %v481, 1.442695
  %v483 = vpow.pop %v482
  %v484 = vadd.f32 %v483, 1.0
  %v485 = vrcp.pop %v484
  %v486 = vmul.f32 %v484, %v485
  %v487 = vsub.f32 1.0, %v486
  %v488 = vmul.f32 %v485, %v487
  %v489 = vadd.f32 %v485, %v488
  %vm490 = vweird.f32 %v484
  %vm491 = vweird.f32 %v485
  %vm492 = vmor %vm490, %vm491
  %v493 = vsel %vm492, %v485, %v489
  %v494 = vand.u32 2147483647, %v484
  %vm495 = vcmp.eq.f32.partialorder %v494, 8.507059e+37
  %v496 = vand.u32 %v484, 2147483648
  %v497 = vor.u32 1.1754944e-38, %v496
  %v498 = vsel %vm495, %v497, %v493
  %v499 = vmul.f32 1.0, %v498
  %v500 = vmul.f32 %v499, 2.0
  %v501 = vsub.f32 %v500, 1.0
  %v502 = vmul.f32 %v499, %v362
  %504 = vrot.lane.b32.xlu0 %v501, 64
  %v505 = vpop.permute.xlu0 %504
  %v507 = vmul.f32 %v499, %v505
  %509 = vrot.lane.b32.xlu0 %v507, 32
  %v510 = vpop.permute.xlu0 %509
  %v512 = vadd.f32 %v502, %v510
  %v513 = vtanh.pop %v512
  %515 = vrot.lane.b32.xlu0 %v513, 64
  %v516 = vpop.permute.xlu0 %515
  %v518 = vmul.f32 %v499, %v516
  %s519 = scalar_lea.vmem [#allocation2], 24
  %v520 = vld [vmem:[%s519] sm:$0xff]
  %522 = vrot.lane.b32.xlu0 %v434, 32
  %v523 = vpop.permute.xlu0 %522
  %v524 = vsel %vm147, %v523, 0
  %526 = vmatpush.msra.mxu0 0.0
  %527 = vmatpush.msra.mxu0 0.0
  %528 = vmatpush.msra.mxu0 0.0
  %529 = vmatpush.msra.mxu0 0.0
  %530 = vmatpush.msra.mxu0 0.0
  %531 = vmatpush.msra.mxu0 0.0
  %532 = vmatpush.msra.mxu0 0.0
  %533 = vmatpush.msra.mxu0 0.0
  %534 = vmatpush.msra.mxu0 0.0
  %535 = vmatpush.msra.mxu0 0.0
  %536 = vmatpush.msra.mxu0 0.0
  %537 = vmatpush.msra.mxu0 0.0
  %538 = vmatpush.msra.mxu0 %v130
  %539 = vmatpush.msra.mxu0 %v129
  %540 = vmatpush.msra.mxu0 %v128
  %541 = vmatpush.msra.mxu0 %v127
  %542 = vmatmul.f32.gmra.mxu0 %v524
  %v543 = vpop.f32.mrf.mxu0
  %v544 = vadd.f32 0.0, %v543
  %545 = vdwg.mxu0
  %v546 = vadd.f32 %v520, %v544
  %v547 = vxor.u32 %v546, 2147483648
  %v548 = vmul.f32 %v547, 1.442695
  %v549 = vpow.pop %v548
  %v550 = vadd.f32 %v549, 1.0
  %v551 = vrcp.pop %v550
  %v552 = vmul.f32 %v550, %v551
  %v553 = vsub.f32 1.0, %v552
  %v554 = vmul.f32 %v551, %v553
  %v555 = vadd.f32 %v551, %v554
  %vm556 = vweird.f32 %v550
  %vm557 = vweird.f32 %v551
  %vm558 = vmor %vm556, %vm557
  %v559 = vsel %vm558, %v551, %v555
  %v560 = vand.u32 2147483647, %v550
  %vm561 = vcmp.eq.f32.partialorder %v560, 8.507059e+37
  %v562 = vand.u32 %v550, 2147483648
  %v563 = vor.u32 1.1754944e-38, %v562
  %v564 = vsel %vm561, %v563, %v559
  %v565 = vmul.f32 1.0, %v564
  %v566 = vmul.f32 %v565, 2.0
  %v567 = vsub.f32 %v566, 1.0
  %v568 = vmul.f32 %v565, %v428
  %570 = vrot.lane.b32.xlu0 %v567, 64
  %v571 = vpop.permute.xlu0 %570
  %v573 = vmul.f32 %v565, %v571
  %575 = vrot.lane.b32.xlu0 %v573, 32
  %v576 = vpop.permute.xlu0 %575
  %v578 = vadd.f32 %v568, %v576
  %v579 = vtanh.pop %v578
  %581 = vrot.lane.b32.xlu0 %v579, 64
  %v582 = vpop.permute.xlu0 %581
  %v584 = vmul.f32 %v565, %v582
  %586 = vrot.lane.b32.xlu0 %v518, 32
  %v587 = vpop.permute.xlu0 %586
  %v588 = vsel %vm147, %v587, 0
  %590 = vmatpush.msra.mxu0 0.0
  %591 = vmatpush.msra.mxu0 0.0
  %592 = vmatpush.msra.mxu0 0.0
  %593 = vmatpush.msra.mxu0 0.0
  %594 = vmatpush.msra.mxu0 0.0
  %595 = vmatpush.msra.mxu0 0.0
  %596 = vmatpush.msra.mxu0 0.0
  %597 = vmatpush.msra.mxu0 0.0
  %598 = vmatpush.msra.mxu0 0.0
  %599 = vmatpush.msra.mxu0 0.0
  %600 = vmatpush.msra.mxu0 0.0
  %601 = vmatpush.msra.mxu0 0.0
  %602 = vmatpush.msra.mxu0 %v138
  %603 = vmatpush.msra.mxu0 %v137
  %604 = vmatpush.msra.mxu0 %v136
  %605 = vmatpush.msra.mxu0 %v135
  %606 = vmatmul.f32.gmra.mxu0 %v588
  %v607 = vpop.f32.mrf.mxu0
  %v608 = vadd.f32 0.0, %v607
  %609 = vdwg.mxu0
  %610 = vmatpush.msra.mxu0 0.0
  %611 = vmatpush.msra.mxu0 0.0
  %612 = vmatpush.msra.mxu0 0.0
  %613 = vmatpush.msra.mxu0 0.0
  %614 = vmatpush.msra.mxu0 0.0
  %615 = vmatpush.msra.mxu0 0.0
  %616 = vmatpush.msra.mxu0 0.0
  %617 = vmatpush.msra.mxu0 0.0
  %618 = vmatpush.msra.mxu0 0.0
  %619 = vmatpush.msra.mxu0 0.0
  %620 = vmatpush.msra.mxu0 0.0
  %621 = vmatpush.msra.mxu0 0.0
  %622 = vmatpush.msra.mxu0 %v134
  %623 = vmatpush.msra.mxu0 %v133
  %624 = vmatpush.msra.mxu0 %v132
  %625 = vmatpush.msra.mxu0 %v131
  %626 = vmatmul.f32.gmra.mxu0 %v524
  %v627 = vpop.f32.mrf.mxu0
  %v628 = vadd.f32 %v608, %v627
  %629 = vdwg.mxu0
  %v630 = vadd.f32 %v628, %v324
  %v631 = vxor.u32 %v630, 2147483648
  %v632 = vmul.f32 %v631, 1.442695
  %v633 = vpow.pop %v632
  %v634 = vadd.f32 %v633, 1.0
  %v635 = vrcp.pop %v634
  %v636 = vmul.f32 %v634, %v635
  %v637 = vsub.f32 1.0, %v636
  %v638 = vmul.f32 %v635, %v637
  %v639 = vadd.f32 %v635, %v638
  %vm640 = vweird.f32 %v634
  %vm641 = vweird.f32 %v635
  %vm642 = vmor %vm640, %vm641
  %v643 = vsel %vm642, %v635, %v639
  %v644 = vand.u32 2147483647, %v634
  %vm645 = vcmp.eq.f32.partialorder %v644, 8.507059e+37
  %v646 = vand.u32 %v634, 2147483648
  %v647 = vor.u32 1.1754944e-38, %v646
  %v648 = vsel %vm645, %v647, %v643
  %v649 = vmul.f32 1.0, %v648
  %v650 = vmul.f32 %v649, 2.0
  %v651 = vsub.f32 %v650, 1.0
  %v652 = vmul.f32 %v649, %v512
  %654 = vrot.lane.b32.xlu0 %v651, 64
  %v655 = vpop.permute.xlu0 %654
  %v657 = vmul.f32 %v649, %v655
  %659 = vrot.lane.b32.xlu0 %v657, 32
  %v660 = vpop.permute.xlu0 %659
  %v662 = vadd.f32 %v652, %v660
  %v663 = vtanh.pop %v662
  %665 = vrot.lane.b32.xlu0 %v663, 64
  %v666 = vpop.permute.xlu0 %665
  %v668 = vmul.f32 %v649, %v666
  %s669 = scalar_lea.vmem [#allocation2], 32
  %v670 = vld [vmem:[%s669] sm:$0xff]
  %672 = vrot.lane.b32.xlu0 %v584, 32
  %v673 = vpop.permute.xlu0 %672
  %v674 = vsel %vm147, %v673, 0
  %676 = vmatpush.msra.mxu0 0.0
  %677 = vmatpush.msra.mxu0 0.0
  %678 = vmatpush.msra.mxu0 0.0
  %679 = vmatpush.msra.mxu0 0.0
  %680 = vmatpush.msra.mxu0 0.0
  %681 = vmatpush.msra.mxu0 0.0
  %682 = vmatpush.msra.mxu0 0.0
  %683 = vmatpush.msra.mxu0 0.0
  %684 = vmatpush.msra.mxu0 0.0
  %685 = vmatpush.msra.mxu0 0.0
  %686 = vmatpush.msra.mxu0 0.0
  %687 = vmatpush.msra.mxu0 0.0
  %688 = vmatpush.msra.mxu0 %v130
  %689 = vmatpush.msra.mxu0 %v129
  %690 = vmatpush.msra.mxu0 %v128
  %691 = vmatpush.msra.mxu0 %v127
  %692 = vmatmul.f32.gmra.mxu0 %v674
  %v693 = vpop.f32.mrf.mxu0
  %v694 = vadd.f32 0.0, %v693
  %695 = vdwg.mxu0
  %v696 = vadd.f32 %v670, %v694
  %v697 = vxor.u32 %v696, 2147483648
  %v698 = vmul.f32 %v697, 1.442695
  %v699 = vpow.pop %v698
  %v700 = vadd.f32 %v699, 1.0
  %v701 = vrcp.pop %v700
  %v702 = vmul.f32 %v700, %v701
  %v703 = vsub.f32 1.0, %v702
  %v704 = vmul.f32 %v701, %v703
  %v705 = vadd.f32 %v701, %v704
  %vm706 = vweird.f32 %v700
  %vm707 = vweird.f32 %v701
  %vm708 = vmor %vm706, %vm707
  %v709 = vsel %vm708, %v701, %v705
  %v710 = vand.u32 2147483647, %v700
  %vm711 = vcmp.eq.f32.partialorder %v710, 8.507059e+37
  %v712 = vand.u32 %v700, 2147483648
  %v713 = vor.u32 1.1754944e-38, %v712
  %v714 = vsel %vm711, %v713, %v709
  %v715 = vmul.f32 1.0, %v714
  %v716 = vmul.f32 %v715, 2.0
  %v717 = vsub.f32 %v716, 1.0
  %v718 = vmul.f32 %v715, %v578
  %720 = vrot.lane.b32.xlu0 %v717, 64
  %v721 = vpop.permute.xlu0 %720
  %v723 = vmul.f32 %v715, %v721
  %725 = vrot.lane.b32.xlu0 %v723, 32
  %v726 = vpop.permute.xlu0 %725
  %v728 = vadd.f32 %v718, %v726
  %v729 = vtanh.pop %v728
  %731 = vrot.lane.b32.xlu0 %v729, 64
  %v732 = vpop.permute.xlu0 %731
  %v734 = vmul.f32 %v715, %v732
  %736 = vrot.lane.b32.xlu0 %v668, 32
  %v737 = vpop.permute.xlu0 %736
  %v738 = vsel %vm147, %v737, 0
  %740 = vmatpush.msra.mxu0 0.0
  %741 = vmatpush.msra.mxu0 0.0
  %742 = vmatpush.msra.mxu0 0.0
  %743 = vmatpush.msra.mxu0 0.0
  %744 = vmatpush.msra.mxu0 0.0
  %745 = vmatpush.msra.mxu0 0.0
  %746 = vmatpush.msra.mxu0 0.0
  %747 = vmatpush.msra.mxu0 0.0
  %748 = vmatpush.msra.mxu0 0.0
  %749 = vmatpush.msra.mxu0 0.0
  %750 = vmatpush.msra.mxu0 0.0
  %751 = vmatpush.msra.mxu0 0.0
  %752 = vmatpush.msra.mxu0 %v138
  %753 = vmatpush.msra.mxu0 %v137
  %754 = vmatpush.msra.mxu0 %v136
  %755 = vmatpush.msra.mxu0 %v135
  %756 = vmatmul.f32.gmra.mxu0 %v738
  %v757 = vpop.f32.mrf.mxu0
  %v758 = vadd.f32 0.0, %v757
  %759 = vdwg.mxu0
  %760 = vmatpush.msra.mxu0 0.0
  %761 = vmatpush.msra.mxu0 0.0
  %762 = vmatpush.msra.mxu0 0.0
  %763 = vmatpush.msra.mxu0 0.0
  %764 = vmatpush.msra.mxu0 0.0
  %765 = vmatpush.msra.mxu0 0.0
  %766 = vmatpush.msra.mxu0 0.0
  %767 = vmatpush.msra.mxu0 0.0
  %768 = vmatpush.msra.mxu0 0.0
  %769 = vmatpush.msra.mxu0 0.0
  %770 = vmatpush.msra.mxu0 0.0
  %771 = vmatpush.msra.mxu0 0.0
  %772 = vmatpush.msra.mxu0 %v134
  %773 = vmatpush.msra.mxu0 %v133
  %774 = vmatpush.msra.mxu0 %v132
  %775 = vmatpush.msra.mxu0 %v131
  %776 = vmatmul.f32.gmra.mxu0 %v674
  %v777 = vpop.f32.mrf.mxu0
  %v778 = vadd.f32 %v758, %v777
  %779 = vdwg.mxu0
  %v780 = vadd.f32 %v778, %v324
  %v781 = vxor.u32 %v780, 2147483648
  %v782 = vmul.f32 %v781, 1.442695
  %v783 = vpow.pop %v782
  %v784 = vadd.f32 %v783, 1.0
  %v785 = vrcp.pop %v784
  %v786 = vmul.f32 %v784, %v785
  %v787 = vsub.f32 1.0, %v786
  %v788 = vmul.f32 %v785, %v787
  %v789 = vadd.f32 %v785, %v788
  %vm790 = vweird.f32 %v784
  %vm791 = vweird.f32 %v785
  %vm792 = vmor %vm790, %vm791
  %v793 = vsel %vm792, %v785, %v789
  %v794 = vand.u32 2147483647, %v784
  %vm795 = vcmp.eq.f32.partialorder %v794, 8.507059e+37
  %v796 = vand.u32 %v784, 2147483648
  %v797 = vor.u32 1.1754944e-38, %v796
  %v798 = vsel %vm795, %v797, %v793
  %v799 = vmul.f32 1.0, %v798
  %v800 = vmul.f32 %v799, 2.0
  %v801 = vsub.f32 %v800, 1.0
  %v802 = vmul.f32 %v799, %v662
  %804 = vrot.lane.b32.xlu0 %v801, 64
  %v805 = vpop.permute.xlu0 %804
  %v807 = vmul.f32 %v799, %v805
  %809 = vrot.lane.b32.xlu0 %v807, 32
  %v810 = vpop.permute.xlu0 %809
  %v812 = vadd.f32 %v802, %v810
  %v813 = vtanh.pop %v812
  %815 = vrot.lane.b32.xlu0 %v813, 64
  %v816 = vpop.permute.xlu0 %815
  %v818 = vmul.f32 %v799, %v816
  %s819 = scalar_lea.vmem [#allocation2], 40
  %v820 = vld [vmem:[%s819] sm:$0xff]
  %822 = vrot.lane.b32.xlu0 %v734, 32
  %v823 = vpop.permute.xlu0 %822
  %v824 = vsel %vm147, %v823, 0
  %826 = vmatpush.msra.mxu0 0.0
  %827 = vmatpush.msra.mxu0 0.0
  %828 = vmatpush.msra.mxu0 0.0
  %829 = vmatpush.msra.mxu0 0.0
  %830 = vmatpush.msra.mxu0 0.0
  %831 = vmatpush.msra.mxu0 0.0
  %832 = vmatpush.msra.mxu0 0.0
  %833 = vmatpush.msra.mxu0 0.0
  %834 = vmatpush.msra.mxu0 0.0
  %835 = vmatpush.msra.mxu0 0.0
  %836 = vmatpush.msra.mxu0 0.0
  %837 = vmatpush.msra.mxu0 0.0
  %838 = vmatpush.msra.mxu0 %v130
  %839 = vmatpush.msra.mxu0 %v129
  %840 = vmatpush.msra.mxu0 %v128
  %841 = vmatpush.msra.mxu0 %v127
  %842 = vmatmul.f32.gmra.mxu0 %v824
  %v843 = vpop.f32.mrf.mxu0
  %v844 = vadd.f32 0.0, %v843
  %845 = vdwg.mxu0
  %v846 = vadd.f32 %v820, %v844
  %v847 = vxor.u32 %v846, 2147483648
  %v848 = vmul.f32 %v847, 1.442695
  %v849 = vpow.pop %v848
  %v850 = vadd.f32 %v849, 1.0
  %v851 = vrcp.pop %v850
  %v852 = vmul.f32 %v850, %v851
  %v853 = vsub.f32 1.0, %v852
  %v854 = vmul.f32 %v851, %v853
  %v855 = vadd.f32 %v851, %v854
  %vm856 = vweird.f32 %v850
  %vm857 = vweird.f32 %v851
  %vm858 = vmor %vm856, %vm857
  %v859 = vsel %vm858, %v851, %v855
  %v860 = vand.u32 2147483647, %v850
  %vm861 = vcmp.eq.f32.partialorder %v860, 8.507059e+37
  %v862 = vand.u32 %v850, 2147483648
  %v863 = vor.u32 1.1754944e-38, %v862
  %v864 = vsel %vm861, %v863, %v859
  %v865 = vmul.f32 1.0, %v864
  %v866 = vmul.f32 %v865, 2.0
  %v867 = vsub.f32 %v866, 1.0
  %v868 = vmul.f32 %v865, %v728
  %870 = vrot.lane.b32.xlu0 %v867, 64
  %v871 = vpop.permute.xlu0 %870
  %v873 = vmul.f32 %v865, %v871
  %875 = vrot.lane.b32.xlu0 %v873, 32
  %v876 = vpop.permute.xlu0 %875
  %v878 = vadd.f32 %v868, %v876
  %v879 = vtanh.pop %v878
  %881 = vrot.lane.b32.xlu0 %v879, 64
  %v882 = vpop.permute.xlu0 %881
  %v884 = vmul.f32 %v865, %v882
  %886 = vrot.lane.b32.xlu0 %v818, 32
  %v887 = vpop.permute.xlu0 %886
  %v888 = vsel %vm147, %v887, 0
  %890 = vmatpush.msra.mxu0 0.0
  %891 = vmatpush.msra.mxu0 0.0
  %892 = vmatpush.msra.mxu0 0.0
  %893 = vmatpush.msra.mxu0 0.0
  %894 = vmatpush.msra.mxu0 0.0
  %895 = vmatpush.msra.mxu0 0.0
  %896 = vmatpush.msra.mxu0 0.0
  %897 = vmatpush.msra.mxu0 0.0
  %898 = vmatpush.msra.mxu0 0.0
  %899 = vmatpush.msra.mxu0 0.0
  %900 = vmatpush.msra.mxu0 0.0
  %901 = vmatpush.msra.mxu0 0.0
  %902 = vmatpush.msra.mxu0 %v138
  %903 = vmatpush.msra.mxu0 %v137
  %904 = vmatpush.msra.mxu0 %v136
  %905 = vmatpush.msra.mxu0 %v135
  %906 = vmatmul.f32.gmra.mxu0 %v888
  %v907 = vpop.f32.mrf.mxu0
  %v908 = vadd.f32 0.0, %v907
  %909 = vdwg.mxu0
  %910 = vmatpush.msra.mxu0 0.0
  %911 = vmatpush.msra.mxu0 0.0
  %912 = vmatpush.msra.mxu0 0.0
  %913 = vmatpush.msra.mxu0 0.0
  %914 = vmatpush.msra.mxu0 0.0
  %915 = vmatpush.msra.mxu0 0.0
  %916 = vmatpush.msra.mxu0 0.0
  %917 = vmatpush.msra.mxu0 0.0
  %918 = vmatpush.msra.mxu0 0.0
  %919 = vmatpush.msra.mxu0 0.0
  %920 = vmatpush.msra.mxu0 0.0
  %921 = vmatpush.msra.mxu0 0.0
  %922 = vmatpush.msra.mxu0 %v134
  %923 = vmatpush.msra.mxu0 %v133
  %924 = vmatpush.msra.mxu0 %v132
  %925 = vmatpush.msra.mxu0 %v131
  %926 = vmatmul.f32.gmra.mxu0 %v824
  %v927 = vpop.f32.mrf.mxu0
  %v928 = vadd.f32 %v908, %v927
  %929 = vdwg.mxu0
  %v930 = vadd.f32 %v928, %v324
  %v931 = vxor.u32 %v930, 2147483648
  %v932 = vmul.f32 %v931, 1.442695
  %v933 = vpow.pop %v932
  %v934 = vadd.f32 %v933, 1.0
  %v935 = vrcp.pop %v934
  %v936 = vmul.f32 %v934, %v935
  %v937 = vsub.f32 1.0, %v936
  %v938 = vmul.f32 %v935, %v937
  %v939 = vadd.f32 %v935, %v938
  %vm940 = vweird.f32 %v934
  %vm941 = vweird.f32 %v935
  %vm942 = vmor %vm940, %vm941
  %v943 = vsel %vm942, %v935, %v939
  %v944 = vand.u32 2147483647, %v934
  %vm945 = vcmp.eq.f32.partialorder %v944, 8.507059e+37
  %v946 = vand.u32 %v934, 2147483648
  %v947 = vor.u32 1.1754944e-38, %v946
  %v948 = vsel %vm945, %v947, %v943
  %v949 = vmul.f32 1.0, %v948
  %v950 = vmul.f32 %v949, 2.0
  %v951 = vsub.f32 %v950, 1.0
  %v952 = vmul.f32 %v949, %v812
  %954 = vrot.lane.b32.xlu0 %v951, 64
  %v955 = vpop.permute.xlu0 %954
  %v957 = vmul.f32 %v949, %v955
  %959 = vrot.lane.b32.xlu0 %v957, 32
  %v960 = vpop.permute.xlu0 %959
  %v962 = vadd.f32 %v952, %v960
  %v963 = vtanh.pop %v962
  %965 = vrot.lane.b32.xlu0 %v963, 64
  %v966 = vpop.permute.xlu0 %965
  %v968 = vmul.f32 %v949, %v966
  %s969 = scalar_lea.vmem [#allocation2], 48
  %v970 = vld [vmem:[%s969] sm:$0xff]
  %972 = vrot.lane.b32.xlu0 %v884, 32
  %v973 = vpop.permute.xlu0 %972
  %v974 = vsel %vm147, %v973, 0
  %976 = vmatpush.msra.mxu0 0.0
  %977 = vmatpush.msra.mxu0 0.0
  %978 = vmatpush.msra.mxu0 0.0
  %979 = vmatpush.msra.mxu0 0.0
  %980 = vmatpush.msra.mxu0 0.0
  %981 = vmatpush.msra.mxu0 0.0
  %982 = vmatpush.msra.mxu0 0.0
  %983 = vmatpush.msra.mxu0 0.0
  %984 = vmatpush.msra.mxu0 0.0
  %985 = vmatpush.msra.mxu0 0.0
  %986 = vmatpush.msra.mxu0 0.0
  %987 = vmatpush.msra.mxu0 0.0
  %988 = vmatpush.msra.mxu0 %v130
  %989 = vmatpush.msra.mxu0 %v129
  %990 = vmatpush.msra.mxu0 %v128
  %991 = vmatpush.msra.mxu0 %v127
  %992 = vmatmul.f32.gmra.mxu0 %v974
  %v993 = vpop.f32.mrf.mxu0
  %v994 = vadd.f32 0.0, %v993
  %995 = vdwg.mxu0
  %v996 = vadd.f32 %v970, %v994
  %v997 = vxor.u32 %v996, 2147483648
  %v998 = vmul.f32 %v997, 1.442695
  %v999 = vpow.pop %v998
  %v1000 = vadd.f32 %v999, 1.0
  %v1001 = vrcp.pop %v1000
  %v1002 = vmul.f32 %v1000, %v1001
  %v1003 = vsub.f32 1.0, %v1002
  %v1004 = vmul.f32 %v1001, %v1003
  %v1005 = vadd.f32 %v1001, %v1004
  %vm1006 = vweird.f32 %v1000
  %vm1007 = vweird.f32 %v1001
  %vm1008 = vmor %vm1006, %vm1007
  %v1009 = vsel %vm1008, %v1001, %v1005
  %v1010 = vand.u32 2147483647, %v1000
  %vm1011 = vcmp.eq.f32.partialorder %v1010, 8.507059e+37
  %v1012 = vand.u32 %v1000, 2147483648
  %v1013 = vor.u32 1.1754944e-38, %v1012
  %v1014 = vsel %vm1011, %v1013, %v1009
  %v1015 = vmul.f32 1.0, %v1014
  %v1016 = vmul.f32 %v1015, 2.0
  %v1017 = vsub.f32 %v1016, 1.0
  %v1018 = vmul.f32 %v1015, %v878
  %1020 = vrot.lane.b32.xlu0 %v1017, 64
  %v1021 = vpop.permute.xlu0 %1020
  %v1023 = vmul.f32 %v1015, %v1021
  %1025 = vrot.lane.b32.xlu0 %v1023, 32
  %v1026 = vpop.permute.xlu0 %1025
  %v1028 = vadd.f32 %v1018, %v1026
  %v1029 = vtanh.pop %v1028
  %1031 = vrot.lane.b32.xlu0 %v1029, 64
  %v1032 = vpop.permute.xlu0 %1031
  %v1034 = vmul.f32 %v1015, %v1032
  %1036 = vrot.lane.b32.xlu0 %v968, 32
  %v1037 = vpop.permute.xlu0 %1036
  %v1038 = vsel %vm147, %v1037, 0
  %1040 = vmatpush.msra.mxu0 0.0
  %1041 = vmatpush.msra.mxu0 0.0
  %1042 = vmatpush.msra.mxu0 0.0
  %1043 = vmatpush.msra.mxu0 0.0
  %1044 = vmatpush.msra.mxu0 0.0
  %1045 = vmatpush.msra.mxu0 0.0
  %1046 = vmatpush.msra.mxu0 0.0
  %1047 = vmatpush.msra.mxu0 0.0
  %1048 = vmatpush.msra.mxu0 0.0
  %1049 = vmatpush.msra.mxu0 0.0
  %1050 = vmatpush.msra.mxu0 0.0
  %1051 = vmatpush.msra.mxu0 0.0
  %1052 = vmatpush.msra.mxu0 %v138
  %1053 = vmatpush.msra.mxu0 %v137
  %1054 = vmatpush.msra.mxu0 %v136
  %1055 = vmatpush.msra.mxu0 %v135
  %1056 = vmatmul.f32.gmra.mxu0 %v1038
  %v1057 = vpop.f32.mrf.mxu0
  %v1058 = vadd.f32 0.0, %v1057
  %1059 = vdwg.mxu0
  %1060 = vmatpush.msra.mxu0 0.0
  %1061 = vmatpush.msra.mxu0 0.0
  %1062 = vmatpush.msra.mxu0 0.0
  %1063 = vmatpush.msra.mxu0 0.0
  %1064 = vmatpush.msra.mxu0 0.0
  %1065 = vmatpush.msra.mxu0 0.0
  %1066 = vmatpush.msra.mxu0 0.0
  %1067 = vmatpush.msra.mxu0 0.0
  %1068 = vmatpush.msra.mxu0 0.0
  %1069 = vmatpush.msra.mxu0 0.0
  %1070 = vmatpush.msra.mxu0 0.0
  %1071 = vmatpush.msra.mxu0 0.0
  %1072 = vmatpush.msra.mxu0 %v134
  %1073 = vmatpush.msra.mxu0 %v133
  %1074 = vmatpush.msra.mxu0 %v132
  %1075 = vmatpush.msra.mxu0 %v131
  %1076 = vmatmul.f32.gmra.mxu0 %v974
  %v1077 = vpop.f32.mrf.mxu0
  %v1078 = vadd.f32 %v1058, %v1077
  %1079 = vdwg.mxu0
  %v1080 = vadd.f32 %v1078, %v324
  %v1081 = vxor.u32 %v1080, 2147483648
  %v1082 = vmul.f32 %v1081, 1.442695
  %v1083 = vpow.pop %v1082
  %v1084 = vadd.f32 %v1083, 1.0
  %v1085 = vrcp.pop %v1084
  %v1086 = vmul.f32 %v1084, %v1085
  %v1087 = vsub.f32 1.0, %v1086
  %v1088 = vmul.f32 %v1085, %v1087
  %v1089 = vadd.f32 %v1085, %v1088
  %vm1090 = vweird.f32 %v1084
  %vm1091 = vweird.f32 %v1085
  %vm1092 = vmor %vm1090, %vm1091
  %v1093 = vsel %vm1092, %v1085, %v1089
  %v1094 = vand.u32 2147483647, %v1084
  %vm1095 = vcmp.eq.f32.partialorder %v1094, 8.507059e+37
  %v1096 = vand.u32 %v1084, 2147483648
  %v1097 = vor.u32 1.1754944e-38, %v1096
  %v1098 = vsel %vm1095, %v1097, %v1093
  %v1099 = vmul.f32 1.0, %v1098
  %v1100 = vmul.f32 %v1099, 2.0
  %v1101 = vsub.f32 %v1100, 1.0
  %v1102 = vmul.f32 %v1099, %v962
  %1104 = vrot.lane.b32.xlu0 %v1101, 64
  %v1105 = vpop.permute.xlu0 %1104
  %v1107 = vmul.f32 %v1099, %v1105
  %1109 = vrot.lane.b32.xlu0 %v1107, 32
  %v1110 = vpop.permute.xlu0 %1109
  %v1112 = vadd.f32 %v1102, %v1110
  %v1113 = vtanh.pop %v1112
  %1115 = vrot.lane.b32.xlu0 %v1113, 64
  %v1116 = vpop.permute.xlu0 %1115
  %v1118 = vmul.f32 %v1099, %v1116
  %s1119 = scalar_lea.vmem [#allocation2], 56
  %v1120 = vld [vmem:[%s1119] sm:$0xff]
  %1122 = vrot.lane.b32.xlu0 %v1034, 32
  %v1123 = vpop.permute.xlu0 %1122
  %v1124 = vsel %vm147, %v1123, 0
  %1126 = vmatpush.msra.mxu0 0.0
  %1127 = vmatpush.msra.mxu0 0.0
  %1128 = vmatpush.msra.mxu0 0.0
  %1129 = vmatpush.msra.mxu0 0.0
  %1130 = vmatpush.msra.mxu0 0.0
  %1131 = vmatpush.msra.mxu0 0.0
  %1132 = vmatpush.msra.mxu0 0.0
  %1133 = vmatpush.msra.mxu0 0.0
  %1134 = vmatpush.msra.mxu0 0.0
  %1135 = vmatpush.msra.mxu0 0.0
  %1136 = vmatpush.msra.mxu0 0.0
  %1137 = vmatpush.msra.mxu0 0.0
  %1138 = vmatpush.msra.mxu0 %v130
  %1139 = vmatpush.msra.mxu0 %v129
  %1140 = vmatpush.msra.mxu0 %v128
  %1141 = vmatpush.msra.mxu0 %v127
  %1142 = vmatmul.f32.gmra.mxu0 %v1124
  %v1143 = vpop.f32.mrf.mxu0
  %v1144 = vadd.f32 0.0, %v1143
  %1145 = vdwg.mxu0
  %v1146 = vadd.f32 %v1120, %v1144
  %v1147 = vxor.u32 %v1146, 2147483648
  %v1148 = vmul.f32 %v1147, 1.442695
  %v1149 = vpow.pop %v1148
  %v1150 = vadd.f32 %v1149, 1.0
  %v1151 = vrcp.pop %v1150
  %v1152 = vmul.f32 %v1150, %v1151
  %v1153 = vsub.f32 1.0, %v1152
  %v1154 = vmul.f32 %v1151, %v1153
  %v1155 = vadd.f32 %v1151, %v1154
  %vm1156 = vweird.f32 %v1150
  %vm1157 = vweird.f32 %v1151
  %vm1158 = vmor %vm1156, %vm1157
  %v1159 = vsel %vm1158, %v1151, %v1155
  %v1160 = vand.u32 2147483647, %v1150
  %vm1161 = vcmp.eq.f32.partialorder %v1160, 8.507059e+37
  %v1162 = vand.u32 %v1150, 2147483648
  %v1163 = vor.u32 1.1754944e-38, %v1162
  %v1164 = vsel %vm1161, %v1163, %v1159
  %v1165 = vmul.f32 1.0, %v1164
  %v1166 = vmul.f32 %v1165, 2.0
  %v1167 = vsub.f32 %v1166, 1.0
  %v1168 = vmul.f32 %v1165, %v1028
  %1170 = vrot.lane.b32.xlu0 %v1167, 64
  %v1171 = vpop.permute.xlu0 %1170
  %v1173 = vmul.f32 %v1165, %v1171
  %1175 = vrot.lane.b32.xlu0 %v1173, 32
  %v1176 = vpop.permute.xlu0 %1175
  %v1178 = vadd.f32 %v1168, %v1176
  %v1179 = vtanh.pop %v1178
  %1181 = vrot.lane.b32.xlu0 %v1179, 64
  %v1182 = vpop.permute.xlu0 %1181
  %v1184 = vmul.f32 %v1165, %v1182
  %1186 = vrot.lane.b32.xlu0 %v1118, 32
  %v1187 = vpop.permute.xlu0 %1186
  %v1188 = vsel %vm147, %v1187, 0
  %1190 = vmatpush.msra.mxu0 0.0
  %1191 = vmatpush.msra.mxu0 0.0
  %1192 = vmatpush.msra.mxu0 0.0
  %1193 = vmatpush.msra.mxu0 0.0
  %1194 = vmatpush.msra.mxu0 0.0
  %1195 = vmatpush.msra.mxu0 0.0
  %1196 = vmatpush.msra.mxu0 0.0
  %1197 = vmatpush.msra.mxu0 0.0
  %1198 = vmatpush.msra.mxu0 0.0
  %1199 = vmatpush.msra.mxu0 0.0
  %1200 = vmatpush.msra.mxu0 0.0
  %1201 = vmatpush.msra.mxu0 0.0
  %1202 = vmatpush.msra.mxu0 %v138
  %1203 = vmatpush.msra.mxu0 %v137
  %1204 = vmatpush.msra.mxu0 %v136
  %1205 = vmatpush.msra.mxu0 %v135
  %1206 = vmatmul.f32.gmra.mxu0 %v1188
  %v1207 = vpop.f32.mrf.mxu0
  %v1208 = vadd.f32 0.0, %v1207
  %1209 = vdwg.mxu0
  %1210 = vmatpush.msra.mxu0 0.0
  %1211 = vmatpush.msra.mxu0 0.0
  %1212 = vmatpush.msra.mxu0 0.0
  %1213 = vmatpush.msra.mxu0 0.0
  %1214 = vmatpush.msra.mxu0 0.0
  %1215 = vmatpush.msra.mxu0 0.0
  %1216 = vmatpush.msra.mxu0 0.0
  %1217 = vmatpush.msra.mxu0 0.0
  %1218 = vmatpush.msra.mxu0 0.0
  %1219 = vmatpush.msra.mxu0 0.0
  %1220 = vmatpush.msra.mxu0 0.0
  %1221 = vmatpush.msra.mxu0 0.0
  %1222 = vmatpush.msra.mxu0 %v134
  %1223 = vmatpush.msra.mxu0 %v133
  %1224 = vmatpush.msra.mxu0 %v132
  %1225 = vmatpush.msra.mxu0 %v131
  %1226 = vmatmul.f32.gmra.mxu0 %v1124
  %v1227 = vpop.f32.mrf.mxu0
  %v1228 = vadd.f32 %v1208, %v1227
  %1229 = vdwg.mxu0
  %v1230 = vadd.f32 %v1228, %v324
  %v1231 = vxor.u32 %v1230, 2147483648
  %v1232 = vmul.f32 %v1231, 1.442695
  %v1233 = vpow.pop %v1232
  %v1234 = vadd.f32 %v1233, 1.0
  %v1235 = vrcp.pop %v1234
  %v1236 = vmul.f32 %v1234, %v1235
  %v1237 = vsub.f32 1.0, %v1236
  %v1238 = vmul.f32 %v1235, %v1237
  %v1239 = vadd.f32 %v1235, %v1238
  %vm1240 = vweird.f32 %v1234
  %vm1241 = vweird.f32 %v1235
  %vm1242 = vmor %vm1240, %vm1241
  %v1243 = vsel %vm1242, %v1235, %v1239
  %v1244 = vand.u32 2147483647, %v1234
  %vm1245 = vcmp.eq.f32.partialorder %v1244, 8.507059e+37
  %v1246 = vand.u32 %v1234, 2147483648
  %v1247 = vor.u32 1.1754944e-38, %v1246
  %v1248 = vsel %vm1245, %v1247, %v1243
  %v1249 = vmul.f32 1.0, %v1248
  %v1250 = vmul.f32 %v1249, 2.0
  %v1251 = vsub.f32 %v1250, 1.0
  %v1252 = vmul.f32 %v1249, %v1112
  %1254 = vrot.lane.b32.xlu0 %v1251, 64
  %v1255 = vpop.permute.xlu0 %1254
  %v1257 = vmul.f32 %v1249, %v1255
  %1259 = vrot.lane.b32.xlu0 %v1257, 32
  %v1260 = vpop.permute.xlu0 %1259
  %v1262 = vadd.f32 %v1252, %v1260
  %v1263 = vtanh.pop %v1262
  %1265 = vrot.lane.b32.xlu0 %v1263, 64
  %v1266 = vpop.permute.xlu0 %1265
  %v1268 = vmul.f32 %v1249, %v1266
  %1270 = vrot.lane.b32.xlu0 %v1268, 32
  %v1271 = vpop.permute.xlu0 %1270
  %v1272 = vsel %vm147, %v1271, 0
  %1274 = vmatpush.msra.mxu0 0.0
  %1275 = vmatpush.msra.mxu0 0.0
  %1276 = vmatpush.msra.mxu0 0.0
  %1277 = vmatpush.msra.mxu0 0.0
  %1278 = vmatpush.msra.mxu0 0.0
  %1279 = vmatpush.msra.mxu0 0.0
  %1280 = vmatpush.msra.mxu0 0.0
  %1281 = vmatpush.msra.mxu0 0.0
  %1282 = vmatpush.msra.mxu0 0.0
  %1283 = vmatpush.msra.mxu0 0.0
  %1284 = vmatpush.msra.mxu0 0.0
  %1285 = vmatpush.msra.mxu0 0.0
  %1286 = vmatpush.msra.mxu0 %v138
  %1287 = vmatpush.msra.mxu0 %v137
  %1288 = vmatpush.msra.mxu0 %v136
  %1289 = vmatpush.msra.mxu0 %v135
  %1290 = vmatmul.f32.gmra.mxu0 %v1272
  %v1291 = vpop.f32.mrf.mxu0
  %v1292 = vadd.f32 0.0, %v1291
  %1293 = vdwg.mxu0
  %1295 = vrot.lane.b32.xlu0 %v1184, 32
  %v1296 = vpop.permute.xlu0 %1295
  %v1297 = vsel %vm147, %v1296, 0
  %1299 = vmatpush.msra.mxu0 0.0
  %1300 = vmatpush.msra.mxu0 0.0
  %1301 = vmatpush.msra.mxu0 0.0
  %1302 = vmatpush.msra.mxu0 0.0
  %1303 = vmatpush.msra.mxu0 0.0
  %1304 = vmatpush.msra.mxu0 0.0
  %1305 = vmatpush.msra.mxu0 0.0
  %1306 = vmatpush.msra.mxu0 0.0
  %1307 = vmatpush.msra.mxu0 0.0
  %1308 = vmatpush.msra.mxu0 0.0
  %1309 = vmatpush.msra.mxu0 0.0
  %1310 = vmatpush.msra.mxu0 0.0
  %1311 = vmatpush.msra.mxu0 %v134
  %1312 = vmatpush.msra.mxu0 %v133
  %1313 = vmatpush.msra.mxu0 %v132
  %1314 = vmatpush.msra.mxu0 %v131
  %1315 = vmatmul.f32.gmra.mxu0 %v1297
  %v1316 = vpop.f32.mrf.mxu0
  %v1317 = vadd.f32 %v1292, %v1316
  %1318 = vdwg.mxu0
  %v1319 = vadd.f32 %v1317, %v324
  %v1320 = vxor.u32 %v1319, 2147483648
  %v1321 = vmul.f32 %v1320, 1.442695
  %v1322 = vpow.pop %v1321
  %v1323 = vadd.f32 %v1322, 1.0
  %v1324 = vrcp.pop %v1323
  %v1325 = vmul.f32 %v1323, %v1324
  %v1326 = vsub.f32 1.0, %v1325
  %v1327 = vmul.f32 %v1324, %v1326
  %v1328 = vadd.f32 %v1324, %v1327
  %vm1329 = vweird.f32 %v1323
  %vm1330 = vweird.f32 %v1324
  %vm1331 = vmor %vm1329, %vm1330
  %v1332 = vsel %vm1331, %v1324, %v1328
  %v1333 = vand.u32 2147483647, %v1323
  %vm1334 = vcmp.eq.f32.partialorder %v1333, 8.507059e+37
  %v1335 = vand.u32 %v1323, 2147483648
  %v1336 = vor.u32 1.1754944e-38, %v1335
  %v1337 = vsel %vm1334, %v1336, %v1332
  %v1338 = vmul.f32 1.0, %v1337
  %v1339 = vmul.f32 %v1338, 2.0
  %v1340 = vsub.f32 %v1339, 1.0
  %v1341 = vmul.f32 %v1338, %v1262
  %1343 = vrot.lane.b32.xlu0 %v1340, 64
  %v1344 = vpop.permute.xlu0 %1343
  %v1346 = vmul.f32 %v1338, %v1344
  %1348 = vrot.lane.b32.xlu0 %v1346, 32
  %v1349 = vpop.permute.xlu0 %1348
  %v1351 = vadd.f32 %v1341, %v1349
  %v1352 = vtanh.pop %v1351
  %1354 = vrot.lane.b32.xlu0 %v1352, 64
  %v1355 = vpop.permute.xlu0 %1354
  %v1357 = vmul.f32 %v1338, %v1355
  %v1358 = vld [vmem:[%s9] sm:$0xff]
  %v1359 = vld [vmem:[%s9 + $0x8] sm:$0xff]
  %v1360 = vld [vmem:[%s9 + $0x10] sm:$0xff]
  %v1361 = vld [vmem:[%s9 + $0x18] sm:$0xff]
  %v1362 = vld [vmem:[#allocation3] sm:$0x1]
  %v1364 = vperm.slane %v1362, 0
  %1367 = vrot.lane.b32.xlu0 %v1357, 32
  %v1368 = vpop.permute.xlu0 %1367
  %v1369 = vsel %vm147, %v1368, 0
  %1371 = vmatpush.msra.mxu0 0.0
  %1372 = vmatpush.msra.mxu0 0.0
  %1373 = vmatpush.msra.mxu0 0.0
  %1374 = vmatpush.msra.mxu0 0.0
  %1375 = vmatpush.msra.mxu0 0.0
  %1376 = vmatpush.msra.mxu0 0.0
  %1377 = vmatpush.msra.mxu0 0.0
  %1378 = vmatpush.msra.mxu0 0.0
  %1379 = vmatpush.msra.mxu0 0.0
  %1380 = vmatpush.msra.mxu0 0.0
  %1381 = vmatpush.msra.mxu0 0.0
  %1382 = vmatpush.msra.mxu0 0.0
  %1383 = vmatpush.msra.mxu0 %v1361
  %1384 = vmatpush.msra.mxu0 %v1360
  %1385 = vmatpush.msra.mxu0 %v1359
  %1386 = vmatpush.msra.mxu0 %v1358
  %1387 = vmatmul.f32.gmra.mxu0 %v1369
  %v1388 = vpop.f32.mrf.mxu0
  %v1389 = vadd.f32 %v1364, %v1388
  %1390 = vdwg.mxu0
  %vm1391 = vcmask 7168
  %1392 = vst.msk [vmem:[%s11] sm:$0xff] %vm1391, %v1389
  // Predicated region
  $region46: #{lstm_demo_forward.1} parent=0 // pred_check
    _
  $region47: #{lstm_demo_forward.1} parent=0 // pred_check_branch
    %1394 = sbr.rel (0) target = $region49
  $region48: #{lstm_demo_forward.1} parent=0 // pred_region
    _
  $region49: #{lstm_demo_forward.1} parent=0 // pred_fallthru
    _
  // Predicated region
  $region50: #{lstm_demo_forward.1} parent=0 // pred_check
    _
  $region51: #{lstm_demo_forward.1} parent=0 // pred_check_branch
    %1396 = sbr.rel (0) target = $region53
  $region52: #{lstm_demo_forward.1} parent=0 // pred_region
    _
  $region53: #{lstm_demo_forward.1} parent=0 // pred_fallthru
    _

</llo_original>
